<compile_context>
chip_gen: v7x
topology: tpu7x:2x2x1
jax: 0.10.0
libtpu: 0.0.40
codegen_flags: <defaults>
</compile_context>

<pallas_src>
import functools
import math

import jax
import jax.numpy as jnp
from jax import lax
from jax.experimental import pallas as pl
from jax.experimental.pallas import tpu as pltpu  # noqa: F401  (kept for TPU-specific tuning hooks)

# ----------------------------------------------------------------------------
# Model config (small, synthetic — BertForMaskedLM('bert-base-uncased') shape
# conventions, scaled down).
# ----------------------------------------------------------------------------
HIDDEN = 32
NUM_HEADS = 2
HEAD_DIM = HIDDEN // NUM_HEADS
INTERMEDIATE = 64
NUM_LAYERS = 2
VOCAB = 100
MAX_POS = 64
TYPE_VOCAB = 2
LN_EPS = 1e-12
NEG_INF = -1e9


# ----------------------------------------------------------------------------
# In-kernel helpers
# ----------------------------------------------------------------------------
def _layernorm(x, gamma, beta, eps=LN_EPS):
    mu = jnp.mean(x, axis=-1, keepdims=True)
    d = x - mu
    var = jnp.mean(d * d, axis=-1, keepdims=True)
    return d * lax.rsqrt(var + eps) * gamma + beta


def _gelu_tanh(x):
    # TODO(synk): HF BERT uses exact erf-GELU; tanh approximation kept for
    # guaranteed Mosaic lowering (numerical difference ~1e-3).
    c = math.sqrt(2.0 / math.pi)
    return 0.5 * x * (1.0 + jnp.tanh(c * (x + 0.044715 * x * x * x)))


def _onehot_rows(ids_col, depth):
    """(M, 1) int32 ids -> (M, depth) f32 one-hot (for MXU embedding gather)."""
    iota = lax.broadcasted_iota(jnp.int32, (ids_col.shape[0], depth), 1)
    return (ids_col == iota).astype(jnp.float32)


# ----------------------------------------------------------------------------
# Single fused Pallas kernel: embedding lookup + embedding LayerNorm + all
# transformer layers.  Activations are (M, H) with M = B*S; attention uses a
# (M, M) block-diagonal additive bias so batch never has to be un-flattened
# inside the kernel.
# ----------------------------------------------------------------------------
def encoder_kernel(
    wid_ref, pid_ref, tid_ref,           # (M, 1) int32: word / position / type ids
    bias_ref,                            # (M, M)  additive attention bias
    wemb_ref, pemb_ref, temb_ref,        # (V, H), (P, H), (2, H) embedding tables
    eg_ref, eb_ref,                      # (1, H)  embedding LN gamma/beta
    wqkv_ref, bqkv_ref,                  # (L, H, 3H), (L, 1, 3H)
    wo_ref, bo_ref,                      # (L, H, H),  (L, 1, H)
    g1_ref, b1_ref,                      # (L, 1, H)
    wi_ref, bi_ref,                      # (L, H, I),  (L, 1, I)
    wf_ref, bf_ref,                      # (L, I, H),  (L, 1, H)
    g2_ref, b2_ref,                      # (L, 1, H)
    out_ref,                             # (M, H)
    *, num_heads, num_layers,
):
    H = wqkv_ref.shape[1]
    hd = H // num_heads
    scale = 1.0 / math.sqrt(hd)

    # ---- fused embedding lookup (one-hot gathers executed on the MXU) ------
    emb = jnp.dot(_onehot_rows(wid_ref[...], wemb_ref.shape[0]), wemb_ref[...],
                  preferred_element_type=jnp.float32)
    emb = emb + jnp.dot(_onehot_rows(pid_ref[...], pemb_ref.shape[0]), pemb_ref[...],
                        preferred_element_type=jnp.float32)
    # TYPE_VOCAB == 2 -> cheap 2-way select instead of a K=2 matmul.
    emb = emb + jnp.where(tid_ref[...] == 0, temb_ref[0:1, :], temb_ref[1:2, :])

    bias = bias_ref[...]                                   # hoisted: loaded once
    x = _layernorm(emb, eg_ref[...], eb_ref[...])          # (M, H)

    for l in range(num_layers):                            # static unroll (L=2)
        # ---- multi-head self-attention ----------------------------------
        qkv = jnp.dot(x, wqkv_ref[l], preferred_element_type=jnp.float32)
        qkv = qkv + bqkv_ref[l]                            # (M, 3H)
        wo = wo_ref[l]                                     # (H, H)

        attn = None
        for h in range(num_heads):                         # static unroll (2 heads)
            q_h = qkv[:, h * hd:(h + 1) * hd]
            k_h = qkv[:, H + h * hd:H + (h + 1) * hd]
            v_h = qkv[:, 2 * H + h * hd:2 * H + (h + 1) * hd]

            # s = q_h @ k_h^T  (contract last dims; no explicit transpose)
            s = lax.dot_general(q_h, k_h, (((1,), (1,)), ((), ())),
                                preferred_element_type=jnp.float32)
            s = s * scale + bias
            s = s - jnp.max(s, axis=-1, keepdims=True)
            p = jnp.exp(s)
            p = p * pl.reciprocal(jnp.sum(p, axis=-1, keepdims=True), approx=True)

            ctx_h = jnp.dot(p, v_h, preferred_element_type=jnp.float32)
            # Fold head h straight into the output projection (no concat):
            part = jnp.dot(ctx_h, wo[h * hd:(h + 1) * hd, :],
                           preferred_element_type=jnp.float32)
            attn = part if attn is None else attn + part
        attn = attn + bo_ref[l]

        h1 = _layernorm(x + attn, g1_ref[l], b1_ref[l])

        # ---- feed-forward -------------------------------------------------
        ff = jnp.dot(h1, wi_ref[l], preferred_element_type=jnp.float32)
        ff = _gelu_tanh(ff + bi_ref[l])
        ff = jnp.dot(ff, wf_ref[l], preferred_element_type=jnp.float32)
        ff = ff + bf_ref[l]
        x = _layernorm(h1 + ff, g2_ref[l], b2_ref[l])

    out_ref[...] = x.astype(out_ref.dtype)


# ----------------------------------------------------------------------------
# Forward wrapper — only integer id / bias preparation happens outside the
# kernel; everything numeric runs in the single pallas_call above.
# ----------------------------------------------------------------------------
def text_encoder_forward(params, input_ids, attention_mask=None,
                         token_type_ids=None):
    """Equivalent of TextEncoder.forward -> last_hidden_state, shape (B,S,H)."""
    B, S = input_ids.shape
    M = B * S
    if attention_mask is None:
        attention_mask = jnp.ones((B, S), jnp.float32)
    if token_type_ids is None:
        token_type_ids = jnp.zeros((B, S), jnp.int32)

    wid = input_ids.reshape(M, 1).astype(jnp.int32)
    pid = jnp.tile(jnp.arange(S, dtype=jnp.int32), B).reshape(M, 1)
    tid = token_type_ids.reshape(M, 1).astype(jnp.int32)

    # Block-diagonal additive attention bias over the flattened token axis,
    # folding in the padding mask.  Tiny (M x M), computed once here.
    bidx = jnp.repeat(jnp.arange(B), S)                     # (M,)
    same_batch = bidx[:, None] == bidx[None, :]             # (M, M)
    key_keep = (attention_mask.reshape(-1).astype(jnp.float32) > 0.5)[None, :]
    bias = jnp.where(same_batch & key_keep, 0.0, NEG_INF).astype(jnp.float32)

    kern = functools.partial(encoder_kernel,
                             num_heads=NUM_HEADS, num_layers=NUM_LAYERS)
    out_flat = pl.pallas_call(
        kern,
        out_shape=jax.ShapeDtypeStruct((M, HIDDEN), jnp.float32),
    )(wid, pid, tid, bias,
      params["word_emb"], params["pos_emb"], params["type_emb"],
      params["emb_ln_g"], params["emb_ln_b"],
      params["wqkv"], params["bqkv"], params["wo"], params["bo"],
      params["g1"], params["b1"],
      params["wi"], params["bi"], params["wf"], params["bf"],
      params["g2"], params["b2"])
    return out_flat.reshape(B, S, HIDDEN)


# ----------------------------------------------------------------------------
# Pure-JAX reference (per-batch attention, no flattening) for a sanity check.
# ----------------------------------------------------------------------------
def reference_forward(params, input_ids, attention_mask, token_type_ids):
    B, S = input_ids.shape

    def ln(x, g, b):
        mu = x.mean(-1, keepdims=True)
        var = ((x - mu) ** 2).mean(-1, keepdims=True)
        return (x - mu) / jnp.sqrt(var + LN_EPS) * g + b

    emb = (params["word_emb"][input_ids]
           + params["pos_emb"][jnp.arange(S)][None, :, :]
           + params["type_emb"][token_type_ids])
    x = ln(emb.astype(jnp.float32), params["emb_ln_g"], params["emb_ln_b"])
    mask_bias = (attention_mask.astype(jnp.float32)[:, None, None, :] - 1.0) * 1e9

    for lp in params["layers"]:
        qkv = x @ lp["wqkv"] + lp["bqkv"]
        q, k, v = jnp.split(qkv, 3, axis=-1)
        heads = lambda t: t.reshape(B, S, NUM_HEADS, HEAD_DIM).transpose(0, 2, 1, 3)
        qh, kh, vh = heads(q), heads(k), heads(v)
        s = jnp.einsum("bhqd,bhkd->bhqk", qh, kh) / math.sqrt(HEAD_DIM) + mask_bias
        p = jax.nn.softmax(s, axis=-1)
        ctx = jnp.einsum("bhqk,bhkd->bhqd", p, vh)
        ctx = ctx.transpose(0, 2, 1, 3).reshape(B, S, HIDDEN)
        attn = ctx @ lp["wo"] + lp["bo"]
        h1 = ln(x + attn, lp["g1"], lp["b1"])
        ff = _gelu_tanh(h1 @ lp["wi"] + lp["bi"]) @ lp["wf"] + lp["bf"]
        x = ln(h1 + ff, lp["g2"], lp["b2"])
    return x


# ----------------------------------------------------------------------------
# Deterministic parameter init.  Per-layer weights are stacked on a leading
# layer axis HERE (once), not per forward call.
# ----------------------------------------------------------------------------
def init_params(key):
    def nrm(k, shape):
        return 0.02 * jax.random.normal(k, shape, jnp.float32)

    keys = jax.random.split(key, 3 + NUM_LAYERS)
    layers = []
    for l in range(NUM_LAYERS):
        lk = jax.random.split(keys[3 + l], 4)
        layers.append({
            "wqkv": nrm(lk[0], (HIDDEN, 3 * HIDDEN)),
            "bqkv": jnp.zeros((1, 3 * HIDDEN), jnp.float32),
            "wo": nrm(lk[1], (HIDDEN, HIDDEN)),
            "bo": jnp.zeros((1, HIDDEN), jnp.float32),
            "g1": jnp.ones((1, HIDDEN), jnp.float32),
            "b1": jnp.zeros((1, HIDDEN), jnp.float32),
            "wi": nrm(lk[2], (HIDDEN, INTERMEDIATE)),
            "bi": jnp.zeros((1, INTERMEDIATE), jnp.float32),
            "wf": nrm(lk[3], (INTERMEDIATE, HIDDEN)),
            "bf": jnp.zeros((1, HIDDEN), jnp.float32),
            "g2": jnp.ones((1, HIDDEN), jnp.float32),
            "b2": jnp.zeros((1, HIDDEN), jnp.float32),
        })

    stk = lambda name: jnp.stack([lp[name] for lp in layers], axis=0)
    params = {
        "word_emb": nrm(keys[0], (VOCAB, HIDDEN)),
        "pos_emb": nrm(keys[1], (MAX_POS, HIDDEN)),
        "type_emb": nrm(keys[2], (TYPE_VOCAB, HIDDEN)),
        "emb_ln_g": jnp.ones((1, HIDDEN), jnp.float32),
        "emb_ln_b": jnp.zeros((1, HIDDEN), jnp.float32),
        # stacked per-layer weights (kernel inputs)
        "wqkv": stk("wqkv"), "bqkv": stk("bqkv"),
        "wo": stk("wo"), "bo": stk("bo"),
        "g1": stk("g1"), "b1": stk("b1"),
        "wi": stk("wi"), "bi": stk("bi"),
        "wf": stk("wf"), "bf": stk("bf"),
        "g2": stk("g2"), "b2": stk("b2"),
        # per-layer list kept only for the pure-JAX reference
        "layers": layers,
    }
    return params


# ----------------------------------------------------------------------------
if __name__ == "__main__":
    B, S = 2, 8
    key = jax.random.PRNGKey(0)
    k_params, k_ids = jax.random.split(key, 2)

    params = init_params(k_params)
    input_ids = jax.random.randint(k_ids, (B, S), 0, VOCAB, dtype=jnp.int32)
    attention_mask = jnp.ones((B, S), jnp.float32)
    token_type_ids = jnp.zeros((B, S), jnp.int32)

    fwd = jax.jit(text_encoder_forward)
    out = fwd(params, input_ids, attention_mask, token_type_ids)
    out = jax.block_until_ready(out)
    assert out.shape == (B, S, HIDDEN), out.shape
    assert out.dtype == jnp.float32

    ref = reference_forward(params, input_ids, attention_mask, token_type_ids)
    max_err = float(jnp.max(jnp.abs(out - ref)))
    assert max_err < 1e-2, f"max abs error vs reference: {max_err}"
    print("KERNEL_OK")
</pallas_src>

<mosaic_0001>
module attributes {stable_mosaic.version = 11 : i64} {
  func.func @encoder_kernel(%arg0: memref<16x1xi32, #tpu.memory_space<vmem>>, %arg1: memref<16x1xi32, #tpu.memory_space<vmem>>, %arg2: memref<16x1xi32, #tpu.memory_space<vmem>>, %arg3: memref<16x16xf32, #tpu.memory_space<vmem>>, %arg4: memref<100x32xf32, #tpu.memory_space<vmem>>, %arg5: memref<64x32xf32, #tpu.memory_space<vmem>>, %arg6: memref<2x32xf32, #tpu.memory_space<vmem>>, %arg7: memref<1x32xf32, #tpu.memory_space<vmem>>, %arg8: memref<1x32xf32, #tpu.memory_space<vmem>>, %arg9: memref<2x32x96xf32, #tpu.memory_space<vmem>>, %arg10: memref<2x1x96xf32, #tpu.memory_space<vmem>>, %arg11: memref<2x32x32xf32, #tpu.memory_space<vmem>>, %arg12: memref<2x1x32xf32, #tpu.memory_space<vmem>>, %arg13: memref<2x1x32xf32, #tpu.memory_space<vmem>>, %arg14: memref<2x1x32xf32, #tpu.memory_space<vmem>>, %arg15: memref<2x32x64xf32, #tpu.memory_space<vmem>>, %arg16: memref<2x1x64xf32, #tpu.memory_space<vmem>>, %arg17: memref<2x64x32xf32, #tpu.memory_space<vmem>>, %arg18: memref<2x1x32xf32, #tpu.memory_space<vmem>>, %arg19: memref<2x1x32xf32, #tpu.memory_space<vmem>>, %arg20: memref<2x1x32xf32, #tpu.memory_space<vmem>>, %arg21: memref<16x32xf32, #tpu.memory_space<vmem>>) attributes {dimension_semantics = [], scalar_prefetch = 0 : i64, scratch_operands = 0 : i64, tpu.core_type = #tpu.core_type<tc>} {
    %c0 = arith.constant 0 : index
    %c0_0 = arith.constant 0 : index
    %0 = vector.load %arg0[%c0, %c0_0] : memref<16x1xi32, #tpu.memory_space<vmem>>, vector<16x1xi32>
    %1 = tpu.iota {dimensions = array<i32: 1>} : vector<16x100xi32>
    %2 = vector.broadcast %0 : vector<16x1xi32> to vector<16x100xi32>
    %3 = arith.cmpi eq, %2, %1 : vector<16x100xi32>
    %4 = arith.extui %3 : vector<16x100xi1> to vector<16x100xi32>
    %5 = arith.sitofp %4 : vector<16x100xi32> to vector<16x100xf32>
    %c0_1 = arith.constant 0 : index
    %c0_2 = arith.constant 0 : index
    %6 = vector.load %arg4[%c0_1, %c0_2] : memref<100x32xf32, #tpu.memory_space<vmem>>, vector<100x32xf32>
    %cst = arith.constant dense<0.000000e+00> : vector<16x32xf32>
    %7 = tpu.matmul %5, %6, %cst {dimension_numbers = #tpu.dot_dimension_numbers<[1], [0], [0], [1], [0, 0, 1, 1], [], []>} : vector<16x100xf32>, vector<100x32xf32>, vector<16x32xf32> -> vector<16x32xf32>
    %c0_3 = arith.constant 0 : index
    %c0_4 = arith.constant 0 : index
    %8 = vector.load %arg1[%c0_3, %c0_4] : memref<16x1xi32, #tpu.memory_space<vmem>>, vector<16x1xi32>
    %9 = tpu.iota {dimensions = array<i32: 1>} : vector<16x64xi32>
    %10 = vector.broadcast %8 : vector<16x1xi32> to vector<16x64xi32>
    %11 = arith.cmpi eq, %10, %9 : vector<16x64xi32>
    %12 = arith.extui %11 : vector<16x64xi1> to vector<16x64xi32>
    %13 = arith.sitofp %12 : vector<16x64xi32> to vector<16x64xf32>
    %c0_5 = arith.constant 0 : index
    %c0_6 = arith.constant 0 : index
    %14 = vector.load %arg5[%c0_5, %c0_6] : memref<64x32xf32, #tpu.memory_space<vmem>>, vector<64x32xf32>
    %cst_7 = arith.constant dense<0.000000e+00> : vector<16x32xf32>
    %15 = tpu.matmul %13, %14, %cst_7 {dimension_numbers = #tpu.dot_dimension_numbers<[1], [0], [0], [1], [0, 0, 1, 1], [], []>} : vector<16x64xf32>, vector<64x32xf32>, vector<16x32xf32> -> vector<16x32xf32>
    %16 = arith.addf %7, %15 : vector<16x32xf32>
    %c0_8 = arith.constant 0 : index
    %c0_9 = arith.constant 0 : index
    %17 = vector.load %arg2[%c0_8, %c0_9] : memref<16x1xi32, #tpu.memory_space<vmem>>, vector<16x1xi32>
    %c0_i32 = arith.constant 0 : i32
    %18 = vector.broadcast %c0_i32 : i32 to vector<16x1xi32>
    %19 = arith.cmpi eq, %17, %18 : vector<16x1xi32>
    %c0_10 = arith.constant 0 : index
    %c0_11 = arith.constant 0 : index
    %20 = vector.load %arg6[%c0_10, %c0_11] : memref<2x32xf32, #tpu.memory_space<vmem>>, vector<1x32xf32>
    %c1 = arith.constant 1 : index
    %c0_12 = arith.constant 0 : index
    %21 = vector.load %arg6[%c1, %c0_12] : memref<2x32xf32, #tpu.memory_space<vmem>>, vector<1x32xf32>
    %22 = vector.shape_cast %19 : vector<16x1xi1> to vector<16x1xi1>
    %23 = vector.broadcast %22 : vector<16x1xi1> to vector<16x32xi1>
    %24 = vector.shape_cast %20 : vector<1x32xf32> to vector<1x32xf32>
    %25 = vector.broadcast %24 : vector<1x32xf32> to vector<16x32xf32>
    %26 = vector.shape_cast %21 : vector<1x32xf32> to vector<1x32xf32>
    %27 = vector.broadcast %26 : vector<1x32xf32> to vector<16x32xf32>
    %28 = arith.select %23, %25, %27 : vector<16x32xi1>, vector<16x32xf32>
    %29 = arith.addf %16, %28 : vector<16x32xf32>
    %c0_13 = arith.constant 0 : index
    %c0_14 = arith.constant 0 : index
    %30 = vector.load %arg3[%c0_13, %c0_14] : memref<16x16xf32, #tpu.memory_space<vmem>>, vector<16x16xf32>
    %c0_15 = arith.constant 0 : index
    %c0_16 = arith.constant 0 : index
    %31 = vector.load %arg7[%c0_15, %c0_16] : memref<1x32xf32, #tpu.memory_space<vmem>>, vector<1x32xf32>
    %c0_17 = arith.constant 0 : index
    %c0_18 = arith.constant 0 : index
    %32 = vector.load %arg8[%c0_17, %c0_18] : memref<1x32xf32, #tpu.memory_space<vmem>>, vector<1x32xf32>
    %cst_19 = arith.constant dense<0.000000e+00> : vector<16xf32>
    %33 = vector.multi_reduction <add>, %29, %cst_19 [1] : vector<16x32xf32> to vector<16xf32>
    %34 = vector.shape_cast %33 : vector<16xf32> to vector<16x1xf32>
    %cst_20 = arith.constant 3.200000e+01 : f32
    %35 = vector.broadcast %cst_20 : f32 to vector<16x1xf32>
    %36 = arith.divf %34, %35 : vector<16x1xf32>
    %37 = vector.broadcast %36 : vector<16x1xf32> to vector<16x32xf32>
    %38 = arith.subf %29, %37 : vector<16x32xf32>
    %39 = arith.mulf %38, %38 : vector<16x32xf32>
    %cst_21 = arith.constant dense<0.000000e+00> : vector<16xf32>
    %40 = vector.multi_reduction <add>, %39, %cst_21 [1] : vector<16x32xf32> to vector<16xf32>
    %41 = vector.shape_cast %40 : vector<16xf32> to vector<16x1xf32>
    %cst_22 = arith.constant 3.200000e+01 : f32
    %42 = vector.broadcast %cst_22 : f32 to vector<16x1xf32>
    %43 = arith.divf %41, %42 : vector<16x1xf32>
    %cst_23 = arith.constant 9.99999996E-13 : f32
    %44 = vector.broadcast %cst_23 : f32 to vector<16x1xf32>
    %45 = arith.addf %43, %44 : vector<16x1xf32>
    %46 = math.rsqrt %45 : vector<16x1xf32>
    %47 = vector.broadcast %46 : vector<16x1xf32> to vector<16x32xf32>
    %48 = arith.mulf %38, %47 : vector<16x32xf32>
    %49 = vector.broadcast %31 : vector<1x32xf32> to vector<16x32xf32>
    %50 = arith.mulf %48, %49 : vector<16x32xf32>
    %51 = vector.broadcast %32 : vector<1x32xf32> to vector<16x32xf32>
    %52 = arith.addf %50, %51 : vector<16x32xf32>
    %c0_24 = arith.constant 0 : index
    %c0_25 = arith.constant 0 : index
    %c0_26 = arith.constant 0 : index
    %53 = vector.load %arg9[%c0_24, %c0_25, %c0_26] : memref<2x32x96xf32, #tpu.memory_space<vmem>>, vector<1x32x96xf32>
    %54 = vector.shape_cast %53 : vector<1x32x96xf32> to vector<32x96xf32>
    %cst_27 = arith.constant dense<0.000000e+00> : vector<16x96xf32>
    %55 = tpu.matmul %52, %54, %cst_27 {dimension_numbers = #tpu.dot_dimension_numbers<[1], [0], [0], [1], [0, 0, 1, 1], [], []>} : vector<16x32xf32>, vector<32x96xf32>, vector<16x96xf32> -> vector<16x96xf32>
    %c0_28 = arith.constant 0 : index
    %c0_29 = arith.constant 0 : index
    %c0_30 = arith.constant 0 : index
    %56 = vector.load %arg10[%c0_28, %c0_29, %c0_30] : memref<2x1x96xf32, #tpu.memory_space<vmem>>, vector<1x1x96xf32>
    %57 = vector.shape_cast %56 : vector<1x1x96xf32> to vector<1x96xf32>
    %58 = vector.broadcast %57 : vector<1x96xf32> to vector<16x96xf32>
    %59 = arith.addf %55, %58 : vector<16x96xf32>
    %c0_31 = arith.constant 0 : index
    %c0_32 = arith.constant 0 : index
    %c0_33 = arith.constant 0 : index
    %60 = vector.load %arg11[%c0_31, %c0_32, %c0_33] : memref<2x32x32xf32, #tpu.memory_space<vmem>>, vector<1x32x32xf32>
    %61 = vector.shape_cast %60 : vector<1x32x32xf32> to vector<32x32xf32>
    %62 = vector.extract_strided_slice %59 {offsets = [0, 0], sizes = [16, 16], strides = [1, 1]} : vector<16x96xf32> to vector<16x16xf32>
    %63 = vector.extract_strided_slice %59 {offsets = [0, 32], sizes = [16, 16], strides = [1, 1]} : vector<16x96xf32> to vector<16x16xf32>
    %64 = vector.extract_strided_slice %59 {offsets = [0, 64], sizes = [16, 16], strides = [1, 1]} : vector<16x96xf32> to vector<16x16xf32>
    %cst_34 = arith.constant dense<0.000000e+00> : vector<16x16xf32>
    %65 = tpu.matmul %62, %63, %cst_34 {dimension_numbers = #tpu.dot_dimension_numbers<[1], [1], [0], [0], [0, 0, 1, 0], [], []>} : vector<16x16xf32>, vector<16x16xf32>, vector<16x16xf32> -> vector<16x16xf32>
    %cst_35 = arith.constant 2.500000e-01 : f32
    %66 = vector.broadcast %cst_35 : f32 to vector<16x16xf32>
    %67 = arith.mulf %65, %66 : vector<16x16xf32>
    %68 = arith.addf %67, %30 : vector<16x16xf32>
    %cst_36 = arith.constant dense<0xFF800000> : vector<16xf32>
    %69 = vector.multi_reduction <maximumf>, %68, %cst_36 [1] : vector<16x16xf32> to vector<16xf32>
    %70 = vector.shape_cast %69 : vector<16xf32> to vector<16x1xf32>
    %71 = vector.broadcast %70 : vector<16x1xf32> to vector<16x16xf32>
    %72 = arith.subf %68, %71 : vector<16x16xf32>
    %73 = math.exp %72 : vector<16x16xf32>
    %cst_37 = arith.constant dense<0.000000e+00> : vector<16xf32>
    %74 = vector.multi_reduction <add>, %73, %cst_37 [1] : vector<16x16xf32> to vector<16xf32>
    %75 = vector.shape_cast %74 : vector<16xf32> to vector<16x1xf32>
    %76 = tpu.reciprocal %75 {approx = true} : vector<16x1xf32> -> vector<16x1xf32>
    %77 = vector.broadcast %76 : vector<16x1xf32> to vector<16x16xf32>
    %78 = arith.mulf %73, %77 : vector<16x16xf32>
    %cst_38 = arith.constant dense<0.000000e+00> : vector<16x16xf32>
    %79 = tpu.matmul %78, %64, %cst_38 {dimension_numbers = #tpu.dot_dimension_numbers<[1], [0], [0], [1], [0, 0, 1, 1], [], []>} : vector<16x16xf32>, vector<16x16xf32>, vector<16x16xf32> -> vector<16x16xf32>
    %80 = vector.extract_strided_slice %61 {offsets = [0, 0], sizes = [16, 32], strides = [1, 1]} : vector<32x32xf32> to vector<16x32xf32>
    %cst_39 = arith.constant dense<0.000000e+00> : vector<16x32xf32>
    %81 = tpu.matmul %79, %80, %cst_39 {dimension_numbers = #tpu.dot_dimension_numbers<[1], [0], [0], [1], [0, 0, 1, 1], [], []>} : vector<16x16xf32>, vector<16x32xf32>, vector<16x32xf32> -> vector<16x32xf32>
    %82 = vector.extract_strided_slice %59 {offsets = [0, 16], sizes = [16, 16], strides = [1, 1]} : vector<16x96xf32> to vector<16x16xf32>
    %83 = vector.extract_strided_slice %59 {offsets = [0, 48], sizes = [16, 16], strides = [1, 1]} : vector<16x96xf32> to vector<16x16xf32>
    %84 = vector.extract_strided_slice %59 {offsets = [0, 80], sizes = [16, 16], strides = [1, 1]} : vector<16x96xf32> to vector<16x16xf32>
    %cst_40 = arith.constant dense<0.000000e+00> : vector<16x16xf32>
    %85 = tpu.matmul %82, %83, %cst_40 {dimension_numbers = #tpu.dot_dimension_numbers<[1], [1], [0], [0], [0, 0, 1, 0], [], []>} : vector<16x16xf32>, vector<16x16xf32>, vector<16x16xf32> -> vector<16x16xf32>
    %cst_41 = arith.constant 2.500000e-01 : f32
    %86 = vector.broadcast %cst_41 : f32 to vector<16x16xf32>
    %87 = arith.mulf %85, %86 : vector<16x16xf32>
    %88 = arith.addf %87, %30 : vector<16x16xf32>
    %cst_42 = arith.constant dense<0xFF800000> : vector<16xf32>
    %89 = vector.multi_reduction <maximumf>, %88, %cst_42 [1] : vector<16x16xf32> to vector<16xf32>
    %90 = vector.shape_cast %89 : vector<16xf32> to vector<16x1xf32>
    %91 = vector.broadcast %90 : vector<16x1xf32> to vector<16x16xf32>
    %92 = arith.subf %88, %91 : vector<16x16xf32>
    %93 = math.exp %92 : vector<16x16xf32>
    %cst_43 = arith.constant dense<0.000000e+00> : vector<16xf32>
    %94 = vector.multi_reduction <add>, %93, %cst_43 [1] : vector<16x16xf32> to vector<16xf32>
    %95 = vector.shape_cast %94 : vector<16xf32> to vector<16x1xf32>
    %96 = tpu.reciprocal %95 {approx = true} : vector<16x1xf32> -> vector<16x1xf32>
    %97 = vector.broadcast %96 : vector<16x1xf32> to vector<16x16xf32>
    %98 = arith.mulf %93, %97 : vector<16x16xf32>
    %cst_44 = arith.constant dense<0.000000e+00> : vector<16x16xf32>
    %99 = tpu.matmul %98, %84, %cst_44 {dimension_numbers = #tpu.dot_dimension_numbers<[1], [0], [0], [1], [0, 0, 1, 1], [], []>} : vector<16x16xf32>, vector<16x16xf32>, vector<16x16xf32> -> vector<16x16xf32>
    %100 = vector.extract_strided_slice %61 {offsets = [16, 0], sizes = [16, 32], strides = [1, 1]} : vector<32x32xf32> to vector<16x32xf32>
    %cst_45 = arith.constant dense<0.000000e+00> : vector<16x32xf32>
    %101 = tpu.matmul %99, %100, %cst_45 {dimension_numbers = #tpu.dot_dimension_numbers<[1], [0], [0], [1], [0, 0, 1, 1], [], []>} : vector<16x16xf32>, vector<16x32xf32>, vector<16x32xf32> -> vector<16x32xf32>
    %102 = arith.addf %81, %101 : vector<16x32xf32>
    %c0_46 = arith.constant 0 : index
    %c0_47 = arith.constant 0 : index
    %c0_48 = arith.constant 0 : index
    %103 = vector.load %arg12[%c0_46, %c0_47, %c0_48] : memref<2x1x32xf32, #tpu.memory_space<vmem>>, vector<1x1x32xf32>
    %104 = vector.shape_cast %103 : vector<1x1x32xf32> to vector<1x32xf32>
    %105 = vector.broadcast %104 : vector<1x32xf32> to vector<16x32xf32>
    %106 = arith.addf %102, %105 : vector<16x32xf32>
    %107 = arith.addf %52, %106 : vector<16x32xf32>
    %c0_49 = arith.constant 0 : index
    %c0_50 = arith.constant 0 : index
    %c0_51 = arith.constant 0 : index
    %108 = vector.load %arg13[%c0_49, %c0_50, %c0_51] : memref<2x1x32xf32, #tpu.memory_space<vmem>>, vector<1x1x32xf32>
    %109 = vector.shape_cast %108 : vector<1x1x32xf32> to vector<1x32xf32>
    %c0_52 = arith.constant 0 : index
    %c0_53 = arith.constant 0 : index
    %c0_54 = arith.constant 0 : index
    %110 = vector.load %arg14[%c0_52, %c0_53, %c0_54] : memref<2x1x32xf32, #tpu.memory_space<vmem>>, vector<1x1x32xf32>
    %111 = vector.shape_cast %110 : vector<1x1x32xf32> to vector<1x32xf32>
    %cst_55 = arith.constant dense<0.000000e+00> : vector<16xf32>
    %112 = vector.multi_reduction <add>, %107, %cst_55 [1] : vector<16x32xf32> to vector<16xf32>
    %113 = vector.shape_cast %112 : vector<16xf32> to vector<16x1xf32>
    %cst_56 = arith.constant 3.200000e+01 : f32
    %114 = vector.broadcast %cst_56 : f32 to vector<16x1xf32>
    %115 = arith.divf %113, %114 : vector<16x1xf32>
    %116 = vector.broadcast %115 : vector<16x1xf32> to vector<16x32xf32>
    %117 = arith.subf %107, %116 : vector<16x32xf32>
    %118 = arith.mulf %117, %117 : vector<16x32xf32>
    %cst_57 = arith.constant dense<0.000000e+00> : vector<16xf32>
    %119 = vector.multi_reduction <add>, %118, %cst_57 [1] : vector<16x32xf32> to vector<16xf32>
    %120 = vector.shape_cast %119 : vector<16xf32> to vector<16x1xf32>
    %cst_58 = arith.constant 3.200000e+01 : f32
    %121 = vector.broadcast %cst_58 : f32 to vector<16x1xf32>
    %122 = arith.divf %120, %121 : vector<16x1xf32>
    %cst_59 = arith.constant 9.99999996E-13 : f32
    %123 = vector.broadcast %cst_59 : f32 to vector<16x1xf32>
    %124 = arith.addf %122, %123 : vector<16x1xf32>
    %125 = math.rsqrt %124 : vector<16x1xf32>
    %126 = vector.broadcast %125 : vector<16x1xf32> to vector<16x32xf32>
    %127 = arith.mulf %117, %126 : vector<16x32xf32>
    %128 = vector.broadcast %109 : vector<1x32xf32> to vector<16x32xf32>
    %129 = arith.mulf %127, %128 : vector<16x32xf32>
    %130 = vector.broadcast %111 : vector<1x32xf32> to vector<16x32xf32>
    %131 = arith.addf %129, %130 : vector<16x32xf32>
    %c0_60 = arith.constant 0 : index
    %c0_61 = arith.constant 0 : index
    %c0_62 = arith.constant 0 : index
    %132 = vector.load %arg15[%c0_60, %c0_61, %c0_62] : memref<2x32x64xf32, #tpu.memory_space<vmem>>, vector<1x32x64xf32>
    %133 = vector.shape_cast %132 : vector<1x32x64xf32> to vector<32x64xf32>
    %cst_63 = arith.constant dense<0.000000e+00> : vector<16x64xf32>
    %134 = tpu.matmul %131, %133, %cst_63 {dimension_numbers = #tpu.dot_dimension_numbers<[1], [0], [0], [1], [0, 0, 1, 1], [], []>} : vector<16x32xf32>, vector<32x64xf32>, vector<16x64xf32> -> vector<16x64xf32>
    %c0_64 = arith.constant 0 : index
    %c0_65 = arith.constant 0 : index
    %c0_66 = arith.constant 0 : index
    %135 = vector.load %arg16[%c0_64, %c0_65, %c0_66] : memref<2x1x64xf32, #tpu.memory_space<vmem>>, vector<1x1x64xf32>
    %136 = vector.shape_cast %135 : vector<1x1x64xf32> to vector<1x64xf32>
    %137 = vector.broadcast %136 : vector<1x64xf32> to vector<16x64xf32>
    %138 = arith.addf %134, %137 : vector<16x64xf32>
    %cst_67 = arith.constant 5.000000e-01 : f32
    %139 = vector.broadcast %cst_67 : f32 to vector<16x64xf32>
    %140 = arith.mulf %139, %138 : vector<16x64xf32>
    %cst_68 = arith.constant 4.471500e-02 : f32
    %141 = vector.broadcast %cst_68 : f32 to vector<16x64xf32>
    %142 = arith.mulf %141, %138 : vector<16x64xf32>
    %143 = arith.mulf %142, %138 : vector<16x64xf32>
    %144 = arith.mulf %143, %138 : vector<16x64xf32>
    %145 = arith.addf %138, %144 : vector<16x64xf32>
    %cst_69 = arith.constant 0.797884583 : f32
    %146 = vector.broadcast %cst_69 : f32 to vector<16x64xf32>
    %147 = arith.mulf %146, %145 : vector<16x64xf32>
    %148 = math.tanh %147 : vector<16x64xf32>
    %cst_70 = arith.constant 1.000000e+00 : f32
    %149 = vector.broadcast %cst_70 : f32 to vector<16x64xf32>
    %150 = arith.addf %149, %148 : vector<16x64xf32>
    %151 = arith.mulf %140, %150 : vector<16x64xf32>
    %c0_71 = arith.constant 0 : index
    %c0_72 = arith.constant 0 : index
    %c0_73 = arith.constant 0 : index
    %152 = vector.load %arg17[%c0_71, %c0_72, %c0_73] : memref<2x64x32xf32, #tpu.memory_space<vmem>>, vector<1x64x32xf32>
    %153 = vector.shape_cast %152 : vector<1x64x32xf32> to vector<64x32xf32>
    %cst_74 = arith.constant dense<0.000000e+00> : vector<16x32xf32>
    %154 = tpu.matmul %151, %153, %cst_74 {dimension_numbers = #tpu.dot_dimension_numbers<[1], [0], [0], [1], [0, 0, 1, 1], [], []>} : vector<16x64xf32>, vector<64x32xf32>, vector<16x32xf32> -> vector<16x32xf32>
    %c0_75 = arith.constant 0 : index
    %c0_76 = arith.constant 0 : index
    %c0_77 = arith.constant 0 : index
    %155 = vector.load %arg18[%c0_75, %c0_76, %c0_77] : memref<2x1x32xf32, #tpu.memory_space<vmem>>, vector<1x1x32xf32>
    %156 = vector.shape_cast %155 : vector<1x1x32xf32> to vector<1x32xf32>
    %157 = vector.broadcast %156 : vector<1x32xf32> to vector<16x32xf32>
    %158 = arith.addf %154, %157 : vector<16x32xf32>
    %159 = arith.addf %131, %158 : vector<16x32xf32>
    %c0_78 = arith.constant 0 : index
    %c0_79 = arith.constant 0 : index
    %c0_80 = arith.constant 0 : index
    %160 = vector.load %arg19[%c0_78, %c0_79, %c0_80] : memref<2x1x32xf32, #tpu.memory_space<vmem>>, vector<1x1x32xf32>
    %161 = vector.shape_cast %160 : vector<1x1x32xf32> to vector<1x32xf32>
    %c0_81 = arith.constant 0 : index
    %c0_82 = arith.constant 0 : index
    %c0_83 = arith.constant 0 : index
    %162 = vector.load %arg20[%c0_81, %c0_82, %c0_83] : memref<2x1x32xf32, #tpu.memory_space<vmem>>, vector<1x1x32xf32>
    %163 = vector.shape_cast %162 : vector<1x1x32xf32> to vector<1x32xf32>
    %cst_84 = arith.constant dense<0.000000e+00> : vector<16xf32>
    %164 = vector.multi_reduction <add>, %159, %cst_84 [1] : vector<16x32xf32> to vector<16xf32>
    %165 = vector.shape_cast %164 : vector<16xf32> to vector<16x1xf32>
    %cst_85 = arith.constant 3.200000e+01 : f32
    %166 = vector.broadcast %cst_85 : f32 to vector<16x1xf32>
    %167 = arith.divf %165, %166 : vector<16x1xf32>
    %168 = vector.broadcast %167 : vector<16x1xf32> to vector<16x32xf32>
    %169 = arith.subf %159, %168 : vector<16x32xf32>
    %170 = arith.mulf %169, %169 : vector<16x32xf32>
    %cst_86 = arith.constant dense<0.000000e+00> : vector<16xf32>
    %171 = vector.multi_reduction <add>, %170, %cst_86 [1] : vector<16x32xf32> to vector<16xf32>
    %172 = vector.shape_cast %171 : vector<16xf32> to vector<16x1xf32>
    %cst_87 = arith.constant 3.200000e+01 : f32
    %173 = vector.broadcast %cst_87 : f32 to vector<16x1xf32>
    %174 = arith.divf %172, %173 : vector<16x1xf32>
    %cst_88 = arith.constant 9.99999996E-13 : f32
    %175 = vector.broadcast %cst_88 : f32 to vector<16x1xf32>
    %176 = arith.addf %174, %175 : vector<16x1xf32>
    %177 = math.rsqrt %176 : vector<16x1xf32>
    %178 = vector.broadcast %177 : vector<16x1xf32> to vector<16x32xf32>
    %179 = arith.mulf %169, %178 : vector<16x32xf32>
    %180 = vector.broadcast %161 : vector<1x32xf32> to vector<16x32xf32>
    %181 = arith.mulf %179, %180 : vector<16x32xf32>
    %182 = vector.broadcast %163 : vector<1x32xf32> to vector<16x32xf32>
    %183 = arith.addf %181, %182 : vector<16x32xf32>
    %c1_89 = arith.constant 1 : index
    %c0_90 = arith.constant 0 : index
    %c0_91 = arith.constant 0 : index
    %184 = vector.load %arg9[%c1_89, %c0_90, %c0_91] : memref<2x32x96xf32, #tpu.memory_space<vmem>>, vector<1x32x96xf32>
    %185 = vector.shape_cast %184 : vector<1x32x96xf32> to vector<32x96xf32>
    %cst_92 = arith.constant dense<0.000000e+00> : vector<16x96xf32>
    %186 = tpu.matmul %183, %185, %cst_92 {dimension_numbers = #tpu.dot_dimension_numbers<[1], [0], [0], [1], [0, 0, 1, 1], [], []>} : vector<16x32xf32>, vector<32x96xf32>, vector<16x96xf32> -> vector<16x96xf32>
    %c1_93 = arith.constant 1 : index
    %c0_94 = arith.constant 0 : index
    %c0_95 = arith.constant 0 : index
    %187 = vector.load %arg10[%c1_93, %c0_94, %c0_95] : memref<2x1x96xf32, #tpu.memory_space<vmem>>, vector<1x1x96xf32>
    %188 = vector.shape_cast %187 : vector<1x1x96xf32> to vector<1x96xf32>
    %189 = vector.broadcast %188 : vector<1x96xf32> to vector<16x96xf32>
    %190 = arith.addf %186, %189 : vector<16x96xf32>
    %c1_96 = arith.constant 1 : index
    %c0_97 = arith.constant 0 : index
    %c0_98 = arith.constant 0 : index
    %191 = vector.load %arg11[%c1_96, %c0_97, %c0_98] : memref<2x32x32xf32, #tpu.memory_space<vmem>>, vector<1x32x32xf32>
    %192 = vector.shape_cast %191 : vector<1x32x32xf32> to vector<32x32xf32>
    %193 = vector.extract_strided_slice %190 {offsets = [0, 0], sizes = [16, 16], strides = [1, 1]} : vector<16x96xf32> to vector<16x16xf32>
    %194 = vector.extract_strided_slice %190 {offsets = [0, 32], sizes = [16, 16], strides = [1, 1]} : vector<16x96xf32> to vector<16x16xf32>
    %195 = vector.extract_strided_slice %190 {offsets = [0, 64], sizes = [16, 16], strides = [1, 1]} : vector<16x96xf32> to vector<16x16xf32>
    %cst_99 = arith.constant dense<0.000000e+00> : vector<16x16xf32>
    %196 = tpu.matmul %193, %194, %cst_99 {dimension_numbers = #tpu.dot_dimension_numbers<[1], [1], [0], [0], [0, 0, 1, 0], [], []>} : vector<16x16xf32>, vector<16x16xf32>, vector<16x16xf32> -> vector<16x16xf32>
    %cst_100 = arith.constant 2.500000e-01 : f32
    %197 = vector.broadcast %cst_100 : f32 to vector<16x16xf32>
    %198 = arith.mulf %196, %197 : vector<16x16xf32>
    %199 = arith.addf %198, %30 : vector<16x16xf32>
    %cst_101 = arith.constant dense<0xFF800000> : vector<16xf32>
    %200 = vector.multi_reduction <maximumf>, %199, %cst_101 [1] : vector<16x16xf32> to vector<16xf32>
    %201 = vector.shape_cast %200 : vector<16xf32> to vector<16x1xf32>
    %202 = vector.broadcast %201 : vector<16x1xf32> to vector<16x16xf32>
    %203 = arith.subf %199, %202 : vector<16x16xf32>
    %204 = math.exp %203 : vector<16x16xf32>
    %cst_102 = arith.constant dense<0.000000e+00> : vector<16xf32>
    %205 = vector.multi_reduction <add>, %204, %cst_102 [1] : vector<16x16xf32> to vector<16xf32>
    %206 = vector.shape_cast %205 : vector<16xf32> to vector<16x1xf32>
    %207 = tpu.reciprocal %206 {approx = true} : vector<16x1xf32> -> vector<16x1xf32>
    %208 = vector.broadcast %207 : vector<16x1xf32> to vector<16x16xf32>
    %209 = arith.mulf %204, %208 : vector<16x16xf32>
    %cst_103 = arith.constant dense<0.000000e+00> : vector<16x16xf32>
    %210 = tpu.matmul %209, %195, %cst_103 {dimension_numbers = #tpu.dot_dimension_numbers<[1], [0], [0], [1], [0, 0, 1, 1], [], []>} : vector<16x16xf32>, vector<16x16xf32>, vector<16x16xf32> -> vector<16x16xf32>
    %211 = vector.extract_strided_slice %192 {offsets = [0, 0], sizes = [16, 32], strides = [1, 1]} : vector<32x32xf32> to vector<16x32xf32>
    %cst_104 = arith.constant dense<0.000000e+00> : vector<16x32xf32>
    %212 = tpu.matmul %210, %211, %cst_104 {dimension_numbers = #tpu.dot_dimension_numbers<[1], [0], [0], [1], [0, 0, 1, 1], [], []>} : vector<16x16xf32>, vector<16x32xf32>, vector<16x32xf32> -> vector<16x32xf32>
    %213 = vector.extract_strided_slice %190 {offsets = [0, 16], sizes = [16, 16], strides = [1, 1]} : vector<16x96xf32> to vector<16x16xf32>
    %214 = vector.extract_strided_slice %190 {offsets = [0, 48], sizes = [16, 16], strides = [1, 1]} : vector<16x96xf32> to vector<16x16xf32>
    %215 = vector.extract_strided_slice %190 {offsets = [0, 80], sizes = [16, 16], strides = [1, 1]} : vector<16x96xf32> to vector<16x16xf32>
    %cst_105 = arith.constant dense<0.000000e+00> : vector<16x16xf32>
    %216 = tpu.matmul %213, %214, %cst_105 {dimension_numbers = #tpu.dot_dimension_numbers<[1], [1], [0], [0], [0, 0, 1, 0], [], []>} : vector<16x16xf32>, vector<16x16xf32>, vector<16x16xf32> -> vector<16x16xf32>
    %cst_106 = arith.constant 2.500000e-01 : f32
    %217 = vector.broadcast %cst_106 : f32 to vector<16x16xf32>
    %218 = arith.mulf %216, %217 : vector<16x16xf32>
    %219 = arith.addf %218, %30 : vector<16x16xf32>
    %cst_107 = arith.constant dense<0xFF800000> : vector<16xf32>
    %220 = vector.multi_reduction <maximumf>, %219, %cst_107 [1] : vector<16x16xf32> to vector<16xf32>
    %221 = vector.shape_cast %220 : vector<16xf32> to vector<16x1xf32>
    %222 = vector.broadcast %221 : vector<16x1xf32> to vector<16x16xf32>
    %223 = arith.subf %219, %222 : vector<16x16xf32>
    %224 = math.exp %223 : vector<16x16xf32>
    %cst_108 = arith.constant dense<0.000000e+00> : vector<16xf32>
    %225 = vector.multi_reduction <add>, %224, %cst_108 [1] : vector<16x16xf32> to vector<16xf32>
    %226 = vector.shape_cast %225 : vector<16xf32> to vector<16x1xf32>
    %227 = tpu.reciprocal %226 {approx = true} : vector<16x1xf32> -> vector<16x1xf32>
    %228 = vector.broadcast %227 : vector<16x1xf32> to vector<16x16xf32>
    %229 = arith.mulf %224, %228 : vector<16x16xf32>
    %cst_109 = arith.constant dense<0.000000e+00> : vector<16x16xf32>
    %230 = tpu.matmul %229, %215, %cst_109 {dimension_numbers = #tpu.dot_dimension_numbers<[1], [0], [0], [1], [0, 0, 1, 1], [], []>} : vector<16x16xf32>, vector<16x16xf32>, vector<16x16xf32> -> vector<16x16xf32>
    %231 = vector.extract_strided_slice %192 {offsets = [16, 0], sizes = [16, 32], strides = [1, 1]} : vector<32x32xf32> to vector<16x32xf32>
    %cst_110 = arith.constant dense<0.000000e+00> : vector<16x32xf32>
    %232 = tpu.matmul %230, %231, %cst_110 {dimension_numbers = #tpu.dot_dimension_numbers<[1], [0], [0], [1], [0, 0, 1, 1], [], []>} : vector<16x16xf32>, vector<16x32xf32>, vector<16x32xf32> -> vector<16x32xf32>
    %233 = arith.addf %212, %232 : vector<16x32xf32>
    %c1_111 = arith.constant 1 : index
    %c0_112 = arith.constant 0 : index
    %c0_113 = arith.constant 0 : index
    %234 = vector.load %arg12[%c1_111, %c0_112, %c0_113] : memref<2x1x32xf32, #tpu.memory_space<vmem>>, vector<1x1x32xf32>
    %235 = vector.shape_cast %234 : vector<1x1x32xf32> to vector<1x32xf32>
    %236 = vector.broadcast %235 : vector<1x32xf32> to vector<16x32xf32>
    %237 = arith.addf %233, %236 : vector<16x32xf32>
    %238 = arith.addf %183, %237 : vector<16x32xf32>
    %c1_114 = arith.constant 1 : index
    %c0_115 = arith.constant 0 : index
    %c0_116 = arith.constant 0 : index
    %239 = vector.load %arg13[%c1_114, %c0_115, %c0_116] : memref<2x1x32xf32, #tpu.memory_space<vmem>>, vector<1x1x32xf32>
    %240 = vector.shape_cast %239 : vector<1x1x32xf32> to vector<1x32xf32>
    %c1_117 = arith.constant 1 : index
    %c0_118 = arith.constant 0 : index
    %c0_119 = arith.constant 0 : index
    %241 = vector.load %arg14[%c1_117, %c0_118, %c0_119] : memref<2x1x32xf32, #tpu.memory_space<vmem>>, vector<1x1x32xf32>
    %242 = vector.shape_cast %241 : vector<1x1x32xf32> to vector<1x32xf32>
    %cst_120 = arith.constant dense<0.000000e+00> : vector<16xf32>
    %243 = vector.multi_reduction <add>, %238, %cst_120 [1] : vector<16x32xf32> to vector<16xf32>
    %244 = vector.shape_cast %243 : vector<16xf32> to vector<16x1xf32>
    %cst_121 = arith.constant 3.200000e+01 : f32
    %245 = vector.broadcast %cst_121 : f32 to vector<16x1xf32>
    %246 = arith.divf %244, %245 : vector<16x1xf32>
    %247 = vector.broadcast %246 : vector<16x1xf32> to vector<16x32xf32>
    %248 = arith.subf %238, %247 : vector<16x32xf32>
    %249 = arith.mulf %248, %248 : vector<16x32xf32>
    %cst_122 = arith.constant dense<0.000000e+00> : vector<16xf32>
    %250 = vector.multi_reduction <add>, %249, %cst_122 [1] : vector<16x32xf32> to vector<16xf32>
    %251 = vector.shape_cast %250 : vector<16xf32> to vector<16x1xf32>
    %cst_123 = arith.constant 3.200000e+01 : f32
    %252 = vector.broadcast %cst_123 : f32 to vector<16x1xf32>
    %253 = arith.divf %251, %252 : vector<16x1xf32>
    %cst_124 = arith.constant 9.99999996E-13 : f32
    %254 = vector.broadcast %cst_124 : f32 to vector<16x1xf32>
    %255 = arith.addf %253, %254 : vector<16x1xf32>
    %256 = math.rsqrt %255 : vector<16x1xf32>
    %257 = vector.broadcast %256 : vector<16x1xf32> to vector<16x32xf32>
    %258 = arith.mulf %248, %257 : vector<16x32xf32>
    %259 = vector.broadcast %240 : vector<1x32xf32> to vector<16x32xf32>
    %260 = arith.mulf %258, %259 : vector<16x32xf32>
    %261 = vector.broadcast %242 : vector<1x32xf32> to vector<16x32xf32>
    %262 = arith.addf %260, %261 : vector<16x32xf32>
    %c1_125 = arith.constant 1 : index
    %c0_126 = arith.constant 0 : index
    %c0_127 = arith.constant 0 : index
    %263 = vector.load %arg15[%c1_125, %c0_126, %c0_127] : memref<2x32x64xf32, #tpu.memory_space<vmem>>, vector<1x32x64xf32>
    %264 = vector.shape_cast %263 : vector<1x32x64xf32> to vector<32x64xf32>
    %cst_128 = arith.constant dense<0.000000e+00> : vector<16x64xf32>
    %265 = tpu.matmul %262, %264, %cst_128 {dimension_numbers = #tpu.dot_dimension_numbers<[1], [0], [0], [1], [0, 0, 1, 1], [], []>} : vector<16x32xf32>, vector<32x64xf32>, vector<16x64xf32> -> vector<16x64xf32>
    %c1_129 = arith.constant 1 : index
    %c0_130 = arith.constant 0 : index
    %c0_131 = arith.constant 0 : index
    %266 = vector.load %arg16[%c1_129, %c0_130, %c0_131] : memref<2x1x64xf32, #tpu.memory_space<vmem>>, vector<1x1x64xf32>
    %267 = vector.shape_cast %266 : vector<1x1x64xf32> to vector<1x64xf32>
    %268 = vector.broadcast %267 : vector<1x64xf32> to vector<16x64xf32>
    %269 = arith.addf %265, %268 : vector<16x64xf32>
    %cst_132 = arith.constant 5.000000e-01 : f32
    %270 = vector.broadcast %cst_132 : f32 to vector<16x64xf32>
    %271 = arith.mulf %270, %269 : vector<16x64xf32>
    %cst_133 = arith.constant 4.471500e-02 : f32
    %272 = vector.broadcast %cst_133 : f32 to vector<16x64xf32>
    %273 = arith.mulf %272, %269 : vector<16x64xf32>
    %274 = arith.mulf %273, %269 : vector<16x64xf32>
    %275 = arith.mulf %274, %269 : vector<16x64xf32>
    %276 = arith.addf %269, %275 : vector<16x64xf32>
    %cst_134 = arith.constant 0.797884583 : f32
    %277 = vector.broadcast %cst_134 : f32 to vector<16x64xf32>
    %278 = arith.mulf %277, %276 : vector<16x64xf32>
    %279 = math.tanh %278 : vector<16x64xf32>
    %cst_135 = arith.constant 1.000000e+00 : f32
    %280 = vector.broadcast %cst_135 : f32 to vector<16x64xf32>
    %281 = arith.addf %280, %279 : vector<16x64xf32>
    %282 = arith.mulf %271, %281 : vector<16x64xf32>
    %c1_136 = arith.constant 1 : index
    %c0_137 = arith.constant 0 : index
    %c0_138 = arith.constant 0 : index
    %283 = vector.load %arg17[%c1_136, %c0_137, %c0_138] : memref<2x64x32xf32, #tpu.memory_space<vmem>>, vector<1x64x32xf32>
    %284 = vector.shape_cast %283 : vector<1x64x32xf32> to vector<64x32xf32>
    %cst_139 = arith.constant dense<0.000000e+00> : vector<16x32xf32>
    %285 = tpu.matmul %282, %284, %cst_139 {dimension_numbers = #tpu.dot_dimension_numbers<[1], [0], [0], [1], [0, 0, 1, 1], [], []>} : vector<16x64xf32>, vector<64x32xf32>, vector<16x32xf32> -> vector<16x32xf32>
    %c1_140 = arith.constant 1 : index
    %c0_141 = arith.constant 0 : index
    %c0_142 = arith.constant 0 : index
    %286 = vector.load %arg18[%c1_140, %c0_141, %c0_142] : memref<2x1x32xf32, #tpu.memory_space<vmem>>, vector<1x1x32xf32>
    %287 = vector.shape_cast %286 : vector<1x1x32xf32> to vector<1x32xf32>
    %288 = vector.broadcast %287 : vector<1x32xf32> to vector<16x32xf32>
    %289 = arith.addf %285, %288 : vector<16x32xf32>
    %290 = arith.addf %262, %289 : vector<16x32xf32>
    %c1_143 = arith.constant 1 : index
    %c0_144 = arith.constant 0 : index
    %c0_145 = arith.constant 0 : index
    %291 = vector.load %arg19[%c1_143, %c0_144, %c0_145] : memref<2x1x32xf32, #tpu.memory_space<vmem>>, vector<1x1x32xf32>
    %292 = vector.shape_cast %291 : vector<1x1x32xf32> to vector<1x32xf32>
    %c1_146 = arith.constant 1 : index
    %c0_147 = arith.constant 0 : index
    %c0_148 = arith.constant 0 : index
    %293 = vector.load %arg20[%c1_146, %c0_147, %c0_148] : memref<2x1x32xf32, #tpu.memory_space<vmem>>, vector<1x1x32xf32>
    %294 = vector.shape_cast %293 : vector<1x1x32xf32> to vector<1x32xf32>
    %cst_149 = arith.constant dense<0.000000e+00> : vector<16xf32>
    %295 = vector.multi_reduction <add>, %290, %cst_149 [1] : vector<16x32xf32> to vector<16xf32>
    %296 = vector.shape_cast %295 : vector<16xf32> to vector<16x1xf32>
    %cst_150 = arith.constant 3.200000e+01 : f32
    %297 = vector.broadcast %cst_150 : f32 to vector<16x1xf32>
    %298 = arith.divf %296, %297 : vector<16x1xf32>
    %299 = vector.broadcast %298 : vector<16x1xf32> to vector<16x32xf32>
    %300 = arith.subf %290, %299 : vector<16x32xf32>
    %301 = arith.mulf %300, %300 : vector<16x32xf32>
    %cst_151 = arith.constant dense<0.000000e+00> : vector<16xf32>
    %302 = vector.multi_reduction <add>, %301, %cst_151 [1] : vector<16x32xf32> to vector<16xf32>
    %303 = vector.shape_cast %302 : vector<16xf32> to vector<16x1xf32>
    %cst_152 = arith.constant 3.200000e+01 : f32
    %304 = vector.broadcast %cst_152 : f32 to vector<16x1xf32>
    %305 = arith.divf %303, %304 : vector<16x1xf32>
    %cst_153 = arith.constant 9.99999996E-13 : f32
    %306 = vector.broadcast %cst_153 : f32 to vector<16x1xf32>
    %307 = arith.addf %305, %306 : vector<16x1xf32>
    %308 = math.rsqrt %307 : vector<16x1xf32>
    %309 = vector.broadcast %308 : vector<16x1xf32> to vector<16x32xf32>
    %310 = arith.mulf %300, %309 : vector<16x32xf32>
    %311 = vector.broadcast %292 : vector<1x32xf32> to vector<16x32xf32>
    %312 = arith.mulf %310, %311 : vector<16x32xf32>
    %313 = vector.broadcast %294 : vector<1x32xf32> to vector<16x32xf32>
    %314 = arith.addf %312, %313 : vector<16x32xf32>
    %c0_154 = arith.constant 0 : index
    %c0_155 = arith.constant 0 : index
    %315 = vector.load %arg21[%c0_154, %c0_155] : memref<16x32xf32, #tpu.memory_space<vmem>>, vector<16x32xf32>
    tpu.vector_store %arg21[%c0_154, %c0_155], %314 {strides = array<i32>} : memref<16x32xf32, #tpu.memory_space<vmem>>, vector<16x32xf32>,
    return
  }
}

</mosaic_0001>

<llo_original>
// kernel: eq.8
$region0: #{eq.8}
  %s0 = inlined_call_operand.vmem [shape: s32[2,8], index: 0, kind: input, shape index: {}]
  %s1 = inlined_call_operand.vmem [shape: s32[16], index: 1, kind: output, shape index: {}]
  $region1: #{eq.8} parent=0
    #allocation0 [shape = 'u8[4096]{0}', space=vmem, size = 0x1000, scoped, tag = 'scoped mem for output reshape']
    #allocation1 [shape = 'u8[4096]{0}', space=vmem, size = 0x1000, scoped, tag = 'scoped mem for input reshape']
    %s3 = sshllo.u32 0, 2
    %v4 = vld [vmem:[%s0] sm:%s3]
    %5 = vst [vmem:[#allocation1] sm:%s3] %v4
    %v6 = vld [vmem:[#allocation1] sm:$0x1]
    %vm7 = vcmask 64512
    %8 = vst.msk [vmem:[#allocation0] sm:$0x1] %vm7, %v6
    %s9 = scalar_lea.vmem [#allocation1], 1
    %v10 = vld [vmem:[%s9] sm:$0x1]
    %11 = vrot.lane.b32.xlu0 %v10, 8
    %v12 = vpop.permute.xlu0 %11
    %vm13 = vcmask 130112
    %14 = vst.msk [vmem:[#allocation0] sm:$0x1] %vm13, %v12
    %s16 = sshllo.u32 0, 1
    %v18 = vld [vmem:[#allocation0] sm:%s16]
    %s19 = sshllo.u32 0, 1
    %20 = vst [vmem:[%s1] sm:%s19] %v18

// kernel: tile.0
$region0: #{tile.0}
  %s0 = inlined_call_operand.vmem [shape: s32[2,8], index: 0, kind: input, shape index: {}]
  %s1 = inlined_call_operand.vmem [shape: s32[16,1], index: 1, kind: output, shape index: {}]
  $region1: #{tile.0} parent=0
    #allocation0 [shape = 'u8[4096]{0}', space=vmem, size = 0x1000, scoped, tag = 'scoped mem for input reshape']
    %s3 = sshllo.u32 0, 2
    %v4 = vld [vmem:[%s0] sm:%s3]
    %5 = vst [vmem:[#allocation0] sm:%s3] %v4
    %v6 = vld [vmem:[#allocation0] sm:$0x3]
    %vm7 = vcmask 7168
    %8 = vst.msk [vmem:[%s1] ss:$8 sm:$0x3] %vm7, %v6
    %v9 = vld [vmem:[#allocation0] sm:$0x3]
    %10 = vrot.lane.b32.xlu0 %v9, 127
    %v11 = vpop.permute.xlu0 %10
    %vm12 = vcmask 7168
    %s13 = scalar_lea.vmem %s1, 1
    %14 = vst.msk [vmem:[%s13] ss:$8 sm:$0x3] %vm12, %v11
    %v15 = vld [vmem:[#allocation0] sm:$0x3]
    %16 = vrot.lane.b32.xlu0 %v15, 126
    %v17 = vpop.permute.xlu0 %16
    %vm18 = vcmask 7168
    %s19 = scalar_lea.vmem %s1, 2
    %20 = vst.msk [vmem:[%s19] ss:$8 sm:$0x3] %vm18, %v17
    %v21 = vld [vmem:[#allocation0] sm:$0x3]
    %22 = vrot.lane.b32.xlu0 %v21, 125
    %v23 = vpop.permute.xlu0 %22
    %vm24 = vcmask 7168
    %s25 = scalar_lea.vmem %s1, 3
    %26 = vst.msk [vmem:[%s25] ss:$8 sm:$0x3] %vm24, %v23
    %v27 = vld [vmem:[#allocation0] sm:$0x3]
    %28 = vrot.lane.b32.xlu0 %v27, 124
    %v29 = vpop.permute.xlu0 %28
    %vm30 = vcmask 7168
    %s31 = scalar_lea.vmem %s1, 4
    %32 = vst.msk [vmem:[%s31] ss:$8 sm:$0x3] %vm30, %v29
    %v33 = vld [vmem:[#allocation0] sm:$0x3]
    %34 = vrot.lane.b32.xlu0 %v33, 123
    %v35 = vpop.permute.xlu0 %34
    %vm36 = vcmask 7168
    %s37 = scalar_lea.vmem %s1, 5
    %38 = vst.msk [vmem:[%s37] ss:$8 sm:$0x3] %vm36, %v35
    %v39 = vld [vmem:[#allocation0] sm:$0x3]
    %40 = vrot.lane.b32.xlu0 %v39, 122
    %v41 = vpop.permute.xlu0 %40
    %vm42 = vcmask 7168
    %s43 = scalar_lea.vmem %s1, 6
    %44 = vst.msk [vmem:[%s43] ss:$8 sm:$0x3] %vm42, %v41
    %v45 = vld [vmem:[#allocation0] sm:$0x3]
    %46 = vrot.lane.b32.xlu0 %v45, 121
    %v47 = vpop.permute.xlu0 %46
    %vm48 = vcmask 7168
    %s49 = scalar_lea.vmem %s1, 7
    %50 = vst.msk [vmem:[%s49] ss:$8 sm:$0x3] %vm48, %v47

// kernel: text_encoder_forward.1
$region0: #{text_encoder_forward.1}
  #allocation0 [shape = 'u32[]', space=smem, size = 0x4, offset = 0x4, fixed_abs, tag = 'smem constant byte address 0x4 - core index']
  #allocation1 [shape = 'u32[144,128]{1,0:T(1,128)}', space=vmem, size = 0x12000, scoped, tag = 'internal scratch']
  %s0 = inlined_call_operand.vmem [shape: s32[16,1], index: 0, kind: input, shape index: {}]
  %s1 = inlined_call_operand.vmem [shape: s32[16,1], index: 1, kind: input, shape index: {}]
  %s2 = inlined_call_operand.vmem [shape: s32[16,1], index: 2, kind: input, shape index: {}]
  %s3 = inlined_call_operand.vmem [shape: f32[16,16], index: 3, kind: input, shape index: {}]
  %s4 = inlined_call_operand.vmem [shape: f32[100,32], index: 4, kind: input, shape index: {}]
  %s5 = inlined_call_operand.vmem [shape: f32[64,32], index: 5, kind: input, shape index: {}]
  %s6 = inlined_call_operand.vmem [shape: f32[2,32], index: 6, kind: input, shape index: {}]
  %s7 = inlined_call_operand.vmem [shape: f32[1,32], index: 7, kind: input, shape index: {}]
  %s8 = inlined_call_operand.vmem [shape: f32[1,32], index: 8, kind: input, shape index: {}]
  %s9 = inlined_call_operand.vmem [shape: f32[2,32,96], index: 9, kind: input, shape index: {}]
  %s10 = inlined_call_operand.vmem [shape: f32[2,1,96], index: 10, kind: input, shape index: {}]
  %s11 = inlined_call_operand.vmem [shape: f32[2,32,32], index: 11, kind: input, shape index: {}]
  %s12 = inlined_call_operand.vmem [shape: f32[2,1,32], index: 12, kind: input, shape index: {}]
  %s13 = inlined_call_operand.vmem [shape: f32[2,1,32], index: 13, kind: input, shape index: {}]
  %s14 = inlined_call_operand.vmem [shape: f32[2,1,32], index: 14, kind: input, shape index: {}]
  %s15 = inlined_call_operand.vmem [shape: f32[2,32,64], index: 15, kind: input, shape index: {}]
  %s16 = inlined_call_operand.vmem [shape: f32[2,1,64], index: 16, kind: input, shape index: {}]
  %s17 = inlined_call_operand.vmem [shape: f32[2,64,32], index: 17, kind: input, shape index: {}]
  %s18 = inlined_call_operand.vmem [shape: f32[2,1,32], index: 18, kind: input, shape index: {}]
  %s19 = inlined_call_operand.vmem [shape: f32[2,1,32], index: 19, kind: input, shape index: {}]
  %s20 = inlined_call_operand.vmem [shape: f32[2,1,32], index: 20, kind: input, shape index: {}]
  %s21 = inlined_call_operand.hbm [shape: f32[16,32], index: 21, kind: output, shape index: {}]
  %s22 = sld [smem:[#allocation0]]
  $region94: #{text_encoder_forward.1} parent=0
    _
  %s24 = ssub.s32 1, %s22
  %s25 = scalar_select 0, %s24, %s22
  $region1: #{text_encoder_forward.1} parent=0
    #allocation2 [shape = 'u8[8192]{0}', space=vmem, size = 0x2000, scoped, tag = 'output window, operand 0, single buffered']
    #allocation3 [shape = 's32[1]{0}', space=sflag, size = 0x4, scoped, tag = 'scoped memory for text_encoder_forward.1']
    %26 = vsyncpa [#allocation3], 0
    // Predicated region
    $region2: #{text_encoder_forward.1} parent=1 // pred_check
      _
    $region3: #{text_encoder_forward.1} parent=1 // pred_check_branch
      %28 = sbr.rel (0) target = $region5
    $region4: #{text_encoder_forward.1} parent=1 // pred_region
      _
    $region5: #{text_encoder_forward.1} parent=1 // pred_fallthru
      _
    // Predicated region
    $region6: #{text_encoder_forward.1} parent=1 // pred_check
      _
    $region7: #{text_encoder_forward.1} parent=1 // pred_check_branch
      %30 = sbr.rel (0) target = $region9
    $region8: #{text_encoder_forward.1} parent=1 // pred_region
      _
    $region9: #{text_encoder_forward.1} parent=1 // pred_fallthru
      _
    // Predicated region
    $region10: #{text_encoder_forward.1} parent=1 // pred_check
      _
    $region11: #{text_encoder_forward.1} parent=1 // pred_check_branch
      %32 = sbr.rel (0) target = $region13
    $region12: #{text_encoder_forward.1} parent=1 // pred_region
      _
    $region13: #{text_encoder_forward.1} parent=1 // pred_fallthru
      _
    // Predicated region
    $region14: #{text_encoder_forward.1} parent=1 // pred_check
      _
    $region15: #{text_encoder_forward.1} parent=1 // pred_check_branch
      %34 = sbr.rel (0) target = $region17
    $region16: #{text_encoder_forward.1} parent=1 // pred_region
      _
    $region17: #{text_encoder_forward.1} parent=1 // pred_fallthru
      _
    // Predicated region
    $region18: #{text_encoder_forward.1} parent=1 // pred_check
      _
    $region19: #{text_encoder_forward.1} parent=1 // pred_check_branch
      %36 = sbr.rel (0) target = $region21
    $region20: #{text_encoder_forward.1} parent=1 // pred_region
      _
    $region21: #{text_encoder_forward.1} parent=1 // pred_fallthru
      _
    // Predicated region
    $region22: #{text_encoder_forward.1} parent=1 // pred_check
      _
    $region23: #{text_encoder_forward.1} parent=1 // pred_check_branch
      %38 = sbr.rel (0) target = $region25
    $region24: #{text_encoder_forward.1} parent=1 // pred_region
      _
    $region25: #{text_encoder_forward.1} parent=1 // pred_fallthru
      _
    // Predicated region
    $region26: #{text_encoder_forward.1} parent=1 // pred_check
      _
    $region27: #{text_encoder_forward.1} parent=1 // pred_check_branch
      %40 = sbr.rel (0) target = $region29
    $region28: #{text_encoder_forward.1} parent=1 // pred_region
      _
    $region29: #{text_encoder_forward.1} parent=1 // pred_fallthru
      _
    // Predicated region
    $region30: #{text_encoder_forward.1} parent=1 // pred_check
      _
    $region31: #{text_encoder_forward.1} parent=1 // pred_check_branch
      %42 = sbr.rel (0) target = $region33
    $region32: #{text_encoder_forward.1} parent=1 // pred_region
      _
    $region33: #{text_encoder_forward.1} parent=1 // pred_fallthru
      _
    // Predicated region
    $region34: #{text_encoder_forward.1} parent=1 // pred_check
      _
    $region35: #{text_encoder_forward.1} parent=1 // pred_check_branch
      %44 = sbr.rel (0) target = $region37
    $region36: #{text_encoder_forward.1} parent=1 // pred_region
      _
    $region37: #{text_encoder_forward.1} parent=1 // pred_fallthru
      _
    // Predicated region
    $region38: #{text_encoder_forward.1} parent=1 // pred_check
      _
    $region39: #{text_encoder_forward.1} parent=1 // pred_check_branch
      %46 = sbr.rel (0) target = $region41
    $region40: #{text_encoder_forward.1} parent=1 // pred_region
      _
    $region41: #{text_encoder_forward.1} parent=1 // pred_fallthru
      _
    // Predicated region
    $region42: #{text_encoder_forward.1} parent=1 // pred_check
      _
    $region43: #{text_encoder_forward.1} parent=1 // pred_check_branch
      %48 = sbr.rel (0) target = $region45
    $region44: #{text_encoder_forward.1} parent=1 // pred_region
      _
    $region45: #{text_encoder_forward.1} parent=1 // pred_fallthru
      _
    // Predicated region
    $region46: #{text_encoder_forward.1} parent=1 // pred_check
      _
    $region47: #{text_encoder_forward.1} parent=1 // pred_check_branch
      %50 = sbr.rel (0) target = $region49
    $region48: #{text_encoder_forward.1} parent=1 // pred_region
      _
    $region49: #{text_encoder_forward.1} parent=1 // pred_fallthru
      _
    // Predicated region
    $region50: #{text_encoder_forward.1} parent=1 // pred_check
      _
    $region51: #{text_encoder_forward.1} parent=1 // pred_check_branch
      %52 = sbr.rel (0) target = $region53
    $region52: #{text_encoder_forward.1} parent=1 // pred_region
      _
    $region53: #{text_encoder_forward.1} parent=1 // pred_fallthru
      _
    // Predicated region
    $region54: #{text_encoder_forward.1} parent=1 // pred_check
      _
    $region55: #{text_encoder_forward.1} parent=1 // pred_check_branch
      %54 = sbr.rel (0) target = $region57
    $region56: #{text_encoder_forward.1} parent=1 // pred_region
      _
    $region57: #{text_encoder_forward.1} parent=1 // pred_fallthru
      _
    // Predicated region
    $region58: #{text_encoder_forward.1} parent=1 // pred_check
      _
    $region59: #{text_encoder_forward.1} parent=1 // pred_check_branch
      %56 = sbr.rel (0) target = $region61
    $region60: #{text_encoder_forward.1} parent=1 // pred_region
      _
    $region61: #{text_encoder_forward.1} parent=1 // pred_fallthru
      _
    // Predicated region
    $region62: #{text_encoder_forward.1} parent=1 // pred_check
      _
    $region63: #{text_encoder_forward.1} parent=1 // pred_check_branch
      %58 = sbr.rel (0) target = $region65
    $region64: #{text_encoder_forward.1} parent=1 // pred_region
      _
    $region65: #{text_encoder_forward.1} parent=1 // pred_fallthru
      _
    // Predicated region
    $region66: #{text_encoder_forward.1} parent=1 // pred_check
      _
    $region67: #{text_encoder_forward.1} parent=1 // pred_check_branch
      %60 = sbr.rel (0) target = $region69
    $region68: #{text_encoder_forward.1} parent=1 // pred_region
      _
    $region69: #{text_encoder_forward.1} parent=1 // pred_fallthru
      _
    // Predicated region
    $region70: #{text_encoder_forward.1} parent=1 // pred_check
      _
    $region71: #{text_encoder_forward.1} parent=1 // pred_check_branch
      %62 = sbr.rel (0) target = $region73
    $region72: #{text_encoder_forward.1} parent=1 // pred_region
      _
    $region73: #{text_encoder_forward.1} parent=1 // pred_fallthru
      _
    // Predicated region
    $region74: #{text_encoder_forward.1} parent=1 // pred_check
      _
    $region75: #{text_encoder_forward.1} parent=1 // pred_check_branch
      %64 = sbr.rel (0) target = $region77
    $region76: #{text_encoder_forward.1} parent=1 // pred_region
      _
    $region77: #{text_encoder_forward.1} parent=1 // pred_fallthru
      _
    // Predicated region
    $region78: #{text_encoder_forward.1} parent=1 // pred_check
      _
    $region79: #{text_encoder_forward.1} parent=1 // pred_check_branch
      %66 = sbr.rel (0) target = $region81
    $region80: #{text_encoder_forward.1} parent=1 // pred_region
      _
    $region81: #{text_encoder_forward.1} parent=1 // pred_fallthru
      _
    // Predicated region
    $region82: #{text_encoder_forward.1} parent=1 // pred_check
      _
    $region83: #{text_encoder_forward.1} parent=1 // pred_check_branch
      %68 = sbr.rel (0) target = $region85
    $region84: #{text_encoder_forward.1} parent=1 // pred_region
      _
    $region85: #{text_encoder_forward.1} parent=1 // pred_fallthru
      _
    %v69 = vld [vmem:[%s0] sm:$0xff]
    %v70 = vld [vmem:[%s0 + $0x8] sm:$0xff]
    %v71 = vlaneseq
    %v72 = vand.u32 %v71, 127
    %73 = vset.pattern.permute.xlu0 0
    %74 = vperm.xlu0 %73, %v69
    %v75 = vpop.permute.xlu0 %74
    %76 = vset.pattern.permute.xlu0 0
    %77 = vperm.xlu0 %76, %v70
    %v78 = vpop.permute.xlu0 %77
    %vm79 = vcmp.eq.s32.totalorder %v75, %v72
    %vm80 = vcmp.eq.s32.totalorder %v78, %v72
    %v81 = vsel %vm79, 1, 0
    %v82 = vsel %vm80, 1, 0
    %v83 = vcvt.s32.f32 %v81
    %v84 = vcvt.s32.f32 %v82
    %v85 = vld [vmem:[%s4] sm:$0xff]
    %v86 = vld [vmem:[%s4 + $0x8] sm:$0xff]
    %v87 = vld [vmem:[%s4 + $0x10] sm:$0xff]
    %v88 = vld [vmem:[%s4 + $0x18] sm:$0xff]
    %v89 = vld [vmem:[%s4 + $0x20] sm:$0xff]
    %v90 = vld [vmem:[%s4 + $0x28] sm:$0xff]
    %v91 = vld [vmem:[%s4 + $0x30] sm:$0xff]
    %v92 = vld [vmem:[%s4 + $0x38] sm:$0xff]
    %v93 = vld [vmem:[%s4 + $0x40] sm:$0xff]
    %v94 = vld [vmem:[%s4 + $0x48] sm:$0xff]
    %v95 = vld [vmem:[%s4 + $0x50] sm:$0xff]
    %v96 = vld [vmem:[%s4 + $0x58] sm:$0xff]
    %v97 = vld [vmem:[%s4 + $0x60] sm:$0xf]
    %v98 = vld [vmem:[%s1] sm:$0xff]
    %v99 = vld [vmem:[%s1 + $0x8] sm:$0xff]
    %100 = vset.pattern.permute.xlu0 0
    %101 = vperm.xlu0 %100, %v98
    %v102 = vpop.permute.xlu0 %101
    %103 = vset.pattern.permute.xlu0 0
    %104 = vperm.xlu0 %103, %v99
    %v105 = vpop.permute.xlu0 %104
    %vm106 = vcmp.eq.s32.totalorder %v102, %v72
    %vm107 = vcmp.eq.s32.totalorder %v105, %v72
    %v108 = vsel %vm106, 1, 0
    %v109 = vsel %vm107, 1, 0
    %v110 = vcvt.s32.f32 %v108
    %v111 = vcvt.s32.f32 %v109
    %v112 = vld [vmem:[%s5] sm:$0xff]
    %v113 = vld [vmem:[%s5 + $0x8] sm:$0xff]
    %v114 = vld [vmem:[%s5 + $0x10] sm:$0xff]
    %v115 = vld [vmem:[%s5 + $0x18] sm:$0xff]
    %v116 = vld [vmem:[%s5 + $0x20] sm:$0xff]
    %v117 = vld [vmem:[%s5 + $0x28] sm:$0xff]
    %v118 = vld [vmem:[%s5 + $0x30] sm:$0xff]
    %v119 = vld [vmem:[%s5 + $0x38] sm:$0xff]
    %vm120 = vcmask 523264
    %v122 = vsel %vm120, %v110, 0
    %v125 = vsel %vm120, %v111, 0
    %127 = vmatprep.subr.mxu0 0.0
    %128 = vmatpush1.msra.mxu0 %v112
    %129 = vmatprep.subr.mxu0 0.0
    %130 = vmatpush1.msra.mxu0 %v113
    %131 = vmatprep.subr.mxu0 0.0
    %132 = vmatpush1.msra.mxu0 %v114
    %133 = vmatprep.subr.mxu0 0.0
    %134 = vmatpush1.msra.mxu0 %v115
    %135 = vmatprep.subr.mxu0 0.0
    %136 = vmatpush1.msra.mxu0 %v116
    %137 = vmatprep.subr.mxu0 0.0
    %138 = vmatpush1.msra.mxu0 %v117
    %139 = vmatprep.subr.mxu0 0.0
    %140 = vmatpush1.msra.mxu0 %v118
    %141 = vmatprep.subr.mxu0 0.0
    %142 = vmatpush1.msra.mxu0 %v119
    %143 = vmatprep.subr.mxu0 0.0
    %144 = vmatpush1.msra.mxu0 0.0
    %145 = vmatprep.subr.mxu0 0.0
    %146 = vmatpush1.msra.mxu0 0.0
    %147 = vmatprep.subr.mxu0 0.0
    %148 = vmatpush1.msra.mxu0 0.0
    %149 = vmatprep.subr.mxu0 0.0
    %150 = vmatpush1.msra.mxu0 0.0
    %151 = vmatprep.subr.mxu0 0.0
    %152 = vmatpush1.msra.mxu0 0.0
    %153 = vmatprep.subr.mxu0 0.0
    %154 = vmatpush1.msra.mxu0 0.0
    %155 = vmatprep.subr.mxu0 0.0
    %156 = vmatpush1.msra.mxu0 0.0
    %157 = vmatprep.subr.mxu0 0.0
    %158 = vmatpush1.msra.mxu0 0.0
    %159 = vmatprep.subr.mxu0 0.0
    %160 = vmatpush1.msra.mxu0 0.0
    %161 = vmatprep.subr.mxu0 0.0
    %162 = vmatpush1.msra.mxu0 0.0
    %163 = vmatprep.subr.mxu0 0.0
    %164 = vmatpush1.msra.mxu0 0.0
    %165 = vmatprep.subr.mxu0 0.0
    %166 = vmatpush1.msra.mxu0 0.0
    %167 = vmatprep.subr.mxu0 0.0
    %168 = vmatpush1.msra.mxu0 0.0
    %169 = vmatprep.subr.mxu0 0.0
    %170 = vmatpush1.msra.mxu0 0.0
    %171 = vmatprep.subr.mxu0 0.0
    %172 = vmatpush1.msra.mxu0 0.0
    %173 = vmatprep.subr.mxu0 0.0
    %174 = vmatpush1.msra.mxu0 0.0
    %175 = vmatprep.subr.mxu0 0.0
    %176 = vmatpush1.msra.mxu0 0.0
    %177 = vmatprep.subr.mxu0 0.0
    %178 = vmatpush1.msra.mxu0 0.0
    %179 = vmatprep.subr.mxu0 0.0
    %180 = vmatpush1.msra.mxu0 0.0
    %181 = vmatprep.subr.mxu0 0.0
    %182 = vmatpush1.msra.mxu0 0.0
    %183 = vmatprep.subr.mxu0 0.0
    %184 = vmatpush1.msra.mxu0 0.0
    %185 = vmatprep.subr.mxu0 0.0
    %186 = vmatpush1.msra.mxu0 0.0
    %187 = vmatprep.subr.mxu0 0.0
    %188 = vmatpush1.msra.mxu0 0.0
    %189 = vmatprep.subr.mxu0 0.0
    %190 = vmatpush1.msra.mxu0 0.0
    %191 = vmatprep.mubr.f32.mxu0 0.0
    %192 = vmatmul.mubr.f32.gmra.mrb[0].mxu0 %v122
    %v193 = vpop.f32.mrb[0].mxu0
    %v194 = vadd.f32 0.0, %v193
    %v195 = vpop.f32.mrb[0].mxu0
    %196 = vmatprep.mubr.f32.mxu0 0.0
    %197 = vmatmul.mubr.f32.gmra.mrb[0].mxu0 %v125
    %v198 = vpop.f32.mrb[0].mxu0
    %v199 = vadd.f32 0.0, %v198
    %v200 = vpop.f32.mrb[0].mxu0
    %201 = vdwg.mxu0
    %vm202 = vcmask 818176
    %v204 = vsel %vm202, %v83, 0
    %v207 = vsel %vm202, %v84, 0
    %vm209 = vcmask 1043456
    %v211 = vsel %vm209, %v97, 0
    %213 = vmatprep.subr.mxu0 0.0
    %214 = vmatpush1.msra.mxu0 %v85
    %215 = vmatprep.subr.mxu0 0.0
    %216 = vmatpush1.msra.mxu0 %v86
    %217 = vmatprep.subr.mxu0 0.0
    %218 = vmatpush1.msra.mxu0 %v87
    %219 = vmatprep.subr.mxu0 0.0
    %220 = vmatpush1.msra.mxu0 %v88
    %221 = vmatprep.subr.mxu0 0.0
    %222 = vmatpush1.msra.mxu0 %v89
    %223 = vmatprep.subr.mxu0 0.0
    %224 = vmatpush1.msra.mxu0 %v90
    %225 = vmatprep.subr.mxu0 0.0
    %226 = vmatpush1.msra.mxu0 %v91
    %227 = vmatprep.subr.mxu0 0.0
    %228 = vmatpush1.msra.mxu0 %v92
    %229 = vmatprep.subr.mxu0 0.0
    %230 = vmatpush1.msra.mxu0 %v93
    %231 = vmatprep.subr.mxu0 0.0
    %232 = vmatpush1.msra.mxu0 %v94
    %233 = vmatprep.subr.mxu0 0.0
    %234 = vmatpush1.msra.mxu0 %v95
    %235 = vmatprep.subr.mxu0 0.0
    %236 = vmatpush1.msra.mxu0 %v96
    %237 = vmatprep.subr.mxu0 0.0
    %238 = vmatpush1.msra.mxu0 %v211
    %239 = vmatprep.subr.mxu0 0.0
    %240 = vmatpush1.msra.mxu0 0.0
    %241 = vmatprep.subr.mxu0 0.0
    %242 = vmatpush1.msra.mxu0 0.0
    %243 = vmatprep.subr.mxu0 0.0
    %244 = vmatpush1.msra.mxu0 0.0
    %245 = vmatprep.subr.mxu0 0.0
    %246 = vmatpush1.msra.mxu0 0.0
    %247 = vmatprep.subr.mxu0 0.0
    %248 = vmatpush1.msra.mxu0 0.0
    %249 = vmatprep.subr.mxu0 0.0
    %250 = vmatpush1.msra.mxu0 0.0
    %251 = vmatprep.subr.mxu0 0.0
    %252 = vmatpush1.msra.mxu0 0.0
    %253 = vmatprep.subr.mxu0 0.0
    %254 = vmatpush1.msra.mxu0 0.0
    %255 = vmatprep.subr.mxu0 0.0
    %256 = vmatpush1.msra.mxu0 0.0
    %257 = vmatprep.subr.mxu0 0.0
    %258 = vmatpush1.msra.mxu0 0.0
    %259 = vmatprep.subr.mxu0 0.0
    %260 = vmatpush1.msra.mxu0 0.0
    %261 = vmatprep.subr.mxu0 0.0
    %262 = vmatpush1.msra.mxu0 0.0
    %263 = vmatprep.subr.mxu0 0.0
    %264 = vmatpush1.msra.mxu0 0.0
    %265 = vmatprep.subr.mxu0 0.0
    %266 = vmatpush1.msra.mxu0 0.0
    %267 = vmatprep.subr.mxu0 0.0
    %268 = vmatpush1.msra.mxu0 0.0
    %269 = vmatprep.subr.mxu0 0.0
    %270 = vmatpush1.msra.mxu0 0.0
    %271 = vmatprep.subr.mxu0 0.0
    %272 = vmatpush1.msra.mxu0 0.0
    %273 = vmatprep.subr.mxu0 0.0
    %274 = vmatpush1.msra.mxu0 0.0
    %275 = vmatprep.subr.mxu0 0.0
    %276 = vmatpush1.msra.mxu0 0.0
    %277 = vmatprep.mubr.f32.mxu0 0.0
    %278 = vmatmul.mubr.f32.gmra.mrb[0].mxu0 %v204
    %v279 = vpop.f32.mrb[0].mxu0
    %v280 = vadd.f32 %v194, %v279
    %v281 = vpop.f32.mrb[0].mxu0
    %282 = vmatprep.mubr.f32.mxu0 0.0
    %283 = vmatmul.mubr.f32.gmra.mrb[0].mxu0 %v207
    %v284 = vpop.f32.mrb[0].mxu0
    %v285 = vadd.f32 %v199, %v284
    %v286 = vpop.f32.mrb[0].mxu0
    %287 = vdwg.mxu0
    %v288 = vld [vmem:[%s2] sm:$0xff]
    %v289 = vld [vmem:[%s2 + $0x8] sm:$0xff]
    %vm290 = vcmp.eq.s32.totalorder %v288, 0
    %vm291 = vcmp.eq.s32.totalorder %v289, 0
    %v292 = vld [vmem:[%s6] sm:$0x1]
    %v293 = vld [vmem:[%s6 + $0x1] sm:$0x1]
    %v294 = vsel %vm290, 1, 0
    %v295 = vsel %vm291, 1, 0
    %296 = vset.pattern.permute.xlu0 0
    %297 = vperm.xlu0 %296, %v294
    %v298 = vpop.permute.xlu0 %297
    %299 = vset.pattern.permute.xlu0 0
    %300 = vperm.xlu0 %299, %v295
    %v301 = vpop.permute.xlu0 %300
    %vm302 = vcmp.eq.s32.totalorder %v298, 1
    %vm303 = vcmp.eq.s32.totalorder %v301, 1
    %v304 = vlaneseq
    %v305 = vshrl.u32 %v304, 7
    %v306 = vsub.s32 0, %v305
    %v307 = vrot.slane %v292, %v306
    %v308 = vlaneseq
    %v309 = vshrl.u32 %v308, 7
    %v310 = vsub.s32 0, %v309
    %v311 = vrot.slane %v293, %v310
    %v312 = vsel %vm302, %v307, %v311
    %v313 = vsel %vm303, %v307, %v311
    %v314 = vadd.f32 %v280, %v312
    %v315 = vadd.f32 %v285, %v313
    %v316 = vld [vmem:[%s3] sm:$0xff]
    %v317 = vld [vmem:[%s3 + $0x8] sm:$0xff]
    %v318 = vld [vmem:[%s7] sm:$0x1]
    %v319 = vld [vmem:[%s8] sm:$0x1]
    %vm320 = vcmask 261120
    %v321 = vsel %vm320, %v314, 0.0
    %322 = vadd.xlane.f32.xlu0 %v321
    %v323 = vpop.xlane.xlu0 %322
    %v324 = vsel %vm320, %v315, 0.0
    %325 = vadd.xlane.f32.xlu0 %v324
    %v326 = vpop.xlane.xlu0 %325
    %v327 = vrcp.pop 32.0
    %v328 = vmul.f32 %v323, %v327
    %v329 = vmul.f32 %v326, %v327
    %v330 = vsub.f32 %v314, %v328
    %v331 = vsub.f32 %v315, %v329
    %v332 = vmul.f32 %v330, %v330
    %v333 = vmul.f32 %v331, %v331
    %v334 = vsel %vm320, %v332, 0.0
    %335 = vadd.xlane.f32.xlu0 %v334
    %v336 = vpop.xlane.xlu0 %335
    %v337 = vsel %vm320, %v333, 0.0
    %338 = vadd.xlane.f32.xlu0 %v337
    %v339 = vpop.xlane.xlu0 %338
    %v340 = vmul.f32 %v336, %v327
    %v341 = vmul.f32 %v339, %v327
    %v342 = vadd.f32 %v340, 1e-12
    %v343 = vadd.f32 %v341, 1e-12
    %v344 = vrsqrt.pop %v342
    %v345 = vrsqrt.pop %v343
    %v346 = vmul.f32 %v330, %v344
    %v347 = vmul.f32 %v331, %v345
    %v349 = vlaneseq
    %v350 = vshrl.u32 %v349, 7
    %v351 = vsub.s32 0, %v350
    %v352 = vrot.slane %v318, %v351
    %v354 = vmul.f32 %v346, %v352
    %v355 = vmul.f32 %v347, %v352
    %v357 = vlaneseq
    %v358 = vshrl.u32 %v357, 7
    %v359 = vsub.s32 0, %v358
    %v360 = vrot.slane %v319, %v359
    %v362 = vadd.f32 %v354, %v360
    %v363 = vadd.f32 %v355, %v360
    %v364 = vld [vmem:[%s9] sm:$0xff]
    %v365 = vld [vmem:[%s9 + $0x8] sm:$0xff]
    %v366 = vld [vmem:[%s9 + $0x10] sm:$0xff]
    %v367 = vld [vmem:[%s9 + $0x18] sm:$0xff]
    %v368 = vld [vmem:[%s10] sm:$0x1]
    %v370 = vlaneseq
    %v371 = vshrl.u32 %v370, 7
    %v372 = vsub.s32 0, %v371
    %v373 = vrot.slane %v368, %v372
    %v376 = vsel %vm320, %v362, 0
    %v379 = vsel %vm320, %v363, 0
    %381 = vmatprep.subr.mxu0 0.0
    %382 = vmatpush1.msra.mxu0 %v364
    %383 = vmatprep.subr.mxu0 0.0
    %384 = vmatpush1.msra.mxu0 %v365
    %385 = vmatprep.subr.mxu0 0.0
    %386 = vmatpush1.msra.mxu0 %v366
    %387 = vmatprep.subr.mxu0 0.0
    %388 = vmatpush1.msra.mxu0 %v367
    %389 = vmatprep.subr.mxu0 0.0
    %390 = vmatpush1.msra.mxu0 0.0
    %391 = vmatprep.subr.mxu0 0.0
    %392 = vmatpush1.msra.mxu0 0.0
    %393 = vmatprep.subr.mxu0 0.0
    %394 = vmatpush1.msra.mxu0 0.0
    %395 = vmatprep.subr.mxu0 0.0
    %396 = vmatpush1.msra.mxu0 0.0
    %397 = vmatprep.subr.mxu0 0.0
    %398 = vmatpush1.msra.mxu0 0.0
    %399 = vmatprep.subr.mxu0 0.0
    %400 = vmatpush1.msra.mxu0 0.0
    %401 = vmatprep.subr.mxu0 0.0
    %402 = vmatpush1.msra.mxu0 0.0
    %403 = vmatprep.subr.mxu0 0.0
    %404 = vmatpush1.msra.mxu0 0.0
    %405 = vmatprep.subr.mxu0 0.0
    %406 = vmatpush1.msra.mxu0 0.0
    %407 = vmatprep.subr.mxu0 0.0
    %408 = vmatpush1.msra.mxu0 0.0
    %409 = vmatprep.subr.mxu0 0.0
    %410 = vmatpush1.msra.mxu0 0.0
    %411 = vmatprep.subr.mxu0 0.0
    %412 = vmatpush1.msra.mxu0 0.0
    %413 = vmatprep.subr.mxu0 0.0
    %414 = vmatpush1.msra.mxu0 0.0
    %415 = vmatprep.subr.mxu0 0.0
    %416 = vmatpush1.msra.mxu0 0.0
    %417 = vmatprep.subr.mxu0 0.0
    %418 = vmatpush1.msra.mxu0 0.0
    %419 = vmatprep.subr.mxu0 0.0
    %420 = vmatpush1.msra.mxu0 0.0
    %421 = vmatprep.subr.mxu0 0.0
    %422 = vmatpush1.msra.mxu0 0.0
    %423 = vmatprep.subr.mxu0 0.0
    %424 = vmatpush1.msra.mxu0 0.0
    %425 = vmatprep.subr.mxu0 0.0
    %426 = vmatpush1.msra.mxu0 0.0
    %427 = vmatprep.subr.mxu0 0.0
    %428 = vmatpush1.msra.mxu0 0.0
    %429 = vmatprep.subr.mxu0 0.0
    %430 = vmatpush1.msra.mxu0 0.0
    %431 = vmatprep.subr.mxu0 0.0
    %432 = vmatpush1.msra.mxu0 0.0
    %433 = vmatprep.subr.mxu0 0.0
    %434 = vmatpush1.msra.mxu0 0.0
    %435 = vmatprep.subr.mxu0 0.0
    %436 = vmatpush1.msra.mxu0 0.0
    %437 = vmatprep.subr.mxu0 0.0
    %438 = vmatpush1.msra.mxu0 0.0
    %439 = vmatprep.subr.mxu0 0.0
    %440 = vmatpush1.msra.mxu0 0.0
    %441 = vmatprep.subr.mxu0 0.0
    %442 = vmatpush1.msra.mxu0 0.0
    %443 = vmatprep.subr.mxu0 0.0
    %444 = vmatpush1.msra.mxu0 0.0
    %445 = vmatprep.mubr.f32.mxu0 0.0
    %446 = vmatmul.mubr.f32.gmra.mrb[0].mxu0 %v376
    %v447 = vpop.f32.mrb[0].mxu0
    %v448 = vadd.f32 %v373, %v447
    %v449 = vpop.f32.mrb[0].mxu0
    %450 = vmatprep.mubr.f32.mxu0 0.0
    %451 = vmatmul.mubr.f32.gmra.mrb[0].mxu0 %v379
    %v452 = vpop.f32.mrb[0].mxu0
    %v453 = vadd.f32 %v373, %v452
    %v454 = vpop.f32.mrb[0].mxu0
    %455 = vdwg.mxu0
    %v456 = vld [vmem:[%s11] sm:$0xff]
    %v457 = vld [vmem:[%s11 + $0x8] sm:$0xff]
    %v458 = vld [vmem:[%s11 + $0x10] sm:$0xff]
    %v459 = vld [vmem:[%s11 + $0x18] sm:$0xff]
    %462 = vrot.lane.b32.xlu0 %v448, 96
    %v463 = vpop.permute.xlu0 %462
    %464 = vrot.lane.b32.xlu0 %v453, 96
    %v465 = vpop.permute.xlu0 %464
    %vm466 = vcmask 130048
    %v467 = vsel %vm466, %v448, 0
    %v469 = vsel %vm466, %v453, 0
    %v471 = vsel %vm466, %v463, 0
    %v473 = vsel %vm466, %v465, 0
    %475 = vmatprep.subr.mxu0 0.0
    %476 = vmatpush1.xpose.msra.mxu0 %v471
    %477 = vmatprep.subr.mxu0 0.0
    %478 = vmatpush1.xpose.msra.mxu0 %v473
    %479 = vmatprep.subr.mxu0 0.0
    %480 = vmatpush1.xpose.msra.mxu0 0.0
    %481 = vmatprep.subr.mxu0 0.0
    %482 = vmatpush1.xpose.msra.mxu0 0.0
    %483 = vmatprep.subr.mxu0 0.0
    %484 = vmatpush1.xpose.msra.mxu0 0.0
    %485 = vmatprep.subr.mxu0 0.0
    %486 = vmatpush1.xpose.msra.mxu0 0.0
    %487 = vmatprep.subr.mxu0 0.0
    %488 = vmatpush1.xpose.msra.mxu0 0.0
    %489 = vmatprep.subr.mxu0 0.0
    %490 = vmatpush1.xpose.msra.mxu0 0.0
    %491 = vmatprep.subr.mxu0 0.0
    %492 = vmatpush1.xpose.msra.mxu0 0.0
    %493 = vmatprep.subr.mxu0 0.0
    %494 = vmatpush1.xpose.msra.mxu0 0.0
    %495 = vmatprep.subr.mxu0 0.0
    %496 = vmatpush1.xpose.msra.mxu0 0.0
    %497 = vmatprep.subr.mxu0 0.0
    %498 = vmatpush1.xpose.msra.mxu0 0.0
    %499 = vmatprep.subr.mxu0 0.0
    %500 = vmatpush1.xpose.msra.mxu0 0.0
    %501 = vmatprep.subr.mxu0 0.0
    %502 = vmatpush1.xpose.msra.mxu0 0.0
    %503 = vmatprep.subr.mxu0 0.0
    %504 = vmatpush1.xpose.msra.mxu0 0.0
    %505 = vmatprep.subr.mxu0 0.0
    %506 = vmatpush1.xpose.msra.mxu0 0.0
    %507 = vmatprep.subr.mxu0 0.0
    %508 = vmatpush1.xpose.msra.mxu0 0.0
    %509 = vmatprep.subr.mxu0 0.0
    %510 = vmatpush1.xpose.msra.mxu0 0.0
    %511 = vmatprep.subr.mxu0 0.0
    %512 = vmatpush1.xpose.msra.mxu0 0.0
    %513 = vmatprep.subr.mxu0 0.0
    %514 = vmatpush1.xpose.msra.mxu0 0.0
    %515 = vmatprep.subr.mxu0 0.0
    %516 = vmatpush1.xpose.msra.mxu0 0.0
    %517 = vmatprep.subr.mxu0 0.0
    %518 = vmatpush1.xpose.msra.mxu0 0.0
    %519 = vmatprep.subr.mxu0 0.0
    %520 = vmatpush1.xpose.msra.mxu0 0.0
    %521 = vmatprep.subr.mxu0 0.0
    %522 = vmatpush1.xpose.msra.mxu0 0.0
    %523 = vmatprep.subr.mxu0 0.0
    %524 = vmatpush1.xpose.msra.mxu0 0.0
    %525 = vmatprep.subr.mxu0 0.0
    %526 = vmatpush1.xpose.msra.mxu0 0.0
    %527 = vmatprep.subr.mxu0 0.0
    %528 = vmatpush1.xpose.msra.mxu0 0.0
    %529 = vmatprep.subr.mxu0 0.0
    %530 = vmatpush1.xpose.msra.mxu0 0.0
    %531 = vmatprep.subr.mxu0 0.0
    %532 = vmatpush1.xpose.msra.mxu0 0.0
    %533 = vmatprep.subr.mxu0 0.0
    %534 = vmatpush1.xpose.msra.mxu0 0.0
    %535 = vmatprep.subr.mxu0 0.0
    %536 = vmatpush1.xpose.msra.mxu0 0.0
    %537 = vmatprep.subr.mxu0 0.0
    %538 = vmatpush1.xpose.msra.mxu0 0.0
    %539 = vmatprep.mubr.f32.mxu0 0.0
    %540 = vmatmul.mubr.f32.gmra.mrb[0].mxu0 %v467
    %v541 = vpop.f32.mrb[0].mxu0
    %v542 = vadd.f32 0.0, %v541
    %v543 = vpop.f32.mrb[0].mxu0
    %544 = vmatprep.mubr.f32.mxu0 0.0
    %545 = vmatmul.mubr.f32.gmra.mrb[0].mxu0 %v469
    %v546 = vpop.f32.mrb[0].mxu0
    %v547 = vadd.f32 0.0, %v546
    %v548 = vpop.f32.mrb[0].mxu0
    %549 = vdwg.mxu0
    %v550 = vmul.f32 %v542, 0.25
    %v551 = vmul.f32 %v547, 0.25
    %v552 = vadd.f32 %v550, %v316
    %v553 = vadd.f32 %v551, %v317
    %v554 = vsel %vm466, %v552, -inf
    %555 = vmax.xlane.f32.xlu0 %v554
    %v556 = vpop.xlane.xlu0 %555
    %v557 = vsel %vm466, %v553, -inf
    %558 = vmax.xlane.f32.xlu0 %v557
    %v559 = vpop.xlane.xlu0 %558
    %v560 = vsub.f32 %v552, %v556
    %v561 = vsub.f32 %v553, %v559
    %v562 = vmul.f32 %v560, 1.442695
    %v563 = vpow.pop %v562
    %v564 = vmul.f32 %v561, 1.442695
    %v565 = vpow.pop %v564
    %v566 = vsel %vm466, %v563, 0.0
    %567 = vadd.xlane.f32.xlu0 %v566
    %v568 = vpop.xlane.xlu0 %567
    %v569 = vsel %vm466, %v565, 0.0
    %570 = vadd.xlane.f32.xlu0 %v569
    %v571 = vpop.xlane.xlu0 %570
    %v572 = vrcp.pop %v568
    %v573 = vrcp.pop %v571
    %v574 = vmul.f32 %v563, %v572
    %v575 = vmul.f32 %v565, %v573
    %576 = vrot.lane.b32.xlu0 %v448, 64
    %v577 = vpop.permute.xlu0 %576
    %578 = vrot.lane.b32.xlu0 %v453, 64
    %v579 = vpop.permute.xlu0 %578
    %v583 = vsel %vm466, %v574, 0
    %v586 = vsel %vm466, %v575, 0
    %588 = vmatprep.subr.mxu0 0.0
    %589 = vmatpush1.msra.mxu0 %v577
    %590 = vmatprep.subr.mxu0 0.0
    %591 = vmatpush1.msra.mxu0 %v579
    %592 = vmatprep.subr.mxu0 0.0
    %593 = vmatpush1.msra.mxu0 0.0
    %594 = vmatprep.subr.mxu0 0.0
    %595 = vmatpush1.msra.mxu0 0.0
    %596 = vmatprep.subr.mxu0 0.0
    %597 = vmatpush1.msra.mxu0 0.0
    %598 = vmatprep.subr.mxu0 0.0
    %599 = vmatpush1.msra.mxu0 0.0
    %600 = vmatprep.subr.mxu0 0.0
    %601 = vmatpush1.msra.mxu0 0.0
    %602 = vmatprep.subr.mxu0 0.0
    %603 = vmatpush1.msra.mxu0 0.0
    %604 = vmatprep.subr.mxu0 0.0
    %605 = vmatpush1.msra.mxu0 0.0
    %606 = vmatprep.subr.mxu0 0.0
    %607 = vmatpush1.msra.mxu0 0.0
    %608 = vmatprep.subr.mxu0 0.0
    %609 = vmatpush1.msra.mxu0 0.0
    %610 = vmatprep.subr.mxu0 0.0
    %611 = vmatpush1.msra.mxu0 0.0
    %612 = vmatprep.subr.mxu0 0.0
    %613 = vmatpush1.msra.mxu0 0.0
    %614 = vmatprep.subr.mxu0 0.0
    %615 = vmatpush1.msra.mxu0 0.0
    %616 = vmatprep.subr.mxu0 0.0
    %617 = vmatpush1.msra.mxu0 0.0
    %618 = vmatprep.subr.mxu0 0.0
    %619 = vmatpush1.msra.mxu0 0.0
    %620 = vmatprep.subr.mxu0 0.0
    %621 = vmatpush1.msra.mxu0 0.0
    %622 = vmatprep.subr.mxu0 0.0
    %623 = vmatpush1.msra.mxu0 0.0
    %624 = vmatprep.subr.mxu0 0.0
    %625 = vmatpush1.msra.mxu0 0.0
    %626 = vmatprep.subr.mxu0 0.0
    %627 = vmatpush1.msra.mxu0 0.0
    %628 = vmatprep.subr.mxu0 0.0
    %629 = vmatpush1.msra.mxu0 0.0
    %630 = vmatprep.subr.mxu0 0.0
    %631 = vmatpush1.msra.mxu0 0.0
    %632 = vmatprep.subr.mxu0 0.0
    %633 = vmatpush1.msra.mxu0 0.0
    %634 = vmatprep.subr.mxu0 0.0
    %635 = vmatpush1.msra.mxu0 0.0
    %636 = vmatprep.subr.mxu0 0.0
    %637 = vmatpush1.msra.mxu0 0.0
    %638 = vmatprep.subr.mxu0 0.0
    %639 = vmatpush1.msra.mxu0 0.0
    %640 = vmatprep.subr.mxu0 0.0
    %641 = vmatpush1.msra.mxu0 0.0
    %642 = vmatprep.subr.mxu0 0.0
    %643 = vmatpush1.msra.mxu0 0.0
    %644 = vmatprep.subr.mxu0 0.0
    %645 = vmatpush1.msra.mxu0 0.0
    %646 = vmatprep.subr.mxu0 0.0
    %647 = vmatpush1.msra.mxu0 0.0
    %648 = vmatprep.subr.mxu0 0.0
    %649 = vmatpush1.msra.mxu0 0.0
    %650 = vmatprep.subr.mxu0 0.0
    %651 = vmatpush1.msra.mxu0 0.0
    %652 = vmatprep.mubr.f32.mxu0 0.0
    %653 = vmatmul.mubr.f32.gmra.mrb[0].mxu0 %v583
    %v654 = vpop.f32.mrb[0].mxu0
    %v655 = vadd.f32 0.0, %v654
    %v656 = vpop.f32.mrb[0].mxu0
    %657 = vmatprep.mubr.f32.mxu0 0.0
    %658 = vmatmul.mubr.f32.gmra.mrb[0].mxu0 %v586
    %v659 = vpop.f32.mrb[0].mxu0
    %v660 = vadd.f32 0.0, %v659
    %v661 = vpop.f32.mrb[0].mxu0
    %662 = vdwg.mxu0
    %663 = vrot.lane.b32.xlu0 %v448, 112
    %v664 = vpop.permute.xlu0 %663
    %665 = vrot.lane.b32.xlu0 %v453, 112
    %v666 = vpop.permute.xlu0 %665
    %667 = vrot.lane.b32.xlu0 %v448, 80
    %v668 = vpop.permute.xlu0 %667
    %669 = vrot.lane.b32.xlu0 %v453, 80
    %v670 = vpop.permute.xlu0 %669
    %v671 = vsel %vm466, %v664, 0
    %v673 = vsel %vm466, %v666, 0
    %v675 = vsel %vm466, %v668, 0
    %v677 = vsel %vm466, %v670, 0
    %679 = vmatprep.subr.mxu0 0.0
    %680 = vmatpush1.xpose.msra.mxu0 %v675
    %681 = vmatprep.subr.mxu0 0.0
    %682 = vmatpush1.xpose.msra.mxu0 %v677
    %683 = vmatprep.subr.mxu0 0.0
    %684 = vmatpush1.xpose.msra.mxu0 0.0
    %685 = vmatprep.subr.mxu0 0.0
    %686 = vmatpush1.xpose.msra.mxu0 0.0
    %687 = vmatprep.subr.mxu0 0.0
    %688 = vmatpush1.xpose.msra.mxu0 0.0
    %689 = vmatprep.subr.mxu0 0.0
    %690 = vmatpush1.xpose.msra.mxu0 0.0
    %691 = vmatprep.subr.mxu0 0.0
    %692 = vmatpush1.xpose.msra.mxu0 0.0
    %693 = vmatprep.subr.mxu0 0.0
    %694 = vmatpush1.xpose.msra.mxu0 0.0
    %695 = vmatprep.subr.mxu0 0.0
    %696 = vmatpush1.xpose.msra.mxu0 0.0
    %697 = vmatprep.subr.mxu0 0.0
    %698 = vmatpush1.xpose.msra.mxu0 0.0
    %699 = vmatprep.subr.mxu0 0.0
    %700 = vmatpush1.xpose.msra.mxu0 0.0
    %701 = vmatprep.subr.mxu0 0.0
    %702 = vmatpush1.xpose.msra.mxu0 0.0
    %703 = vmatprep.subr.mxu0 0.0
    %704 = vmatpush1.xpose.msra.mxu0 0.0
    %705 = vmatprep.subr.mxu0 0.0
    %706 = vmatpush1.xpose.msra.mxu0 0.0
    %707 = vmatprep.subr.mxu0 0.0
    %708 = vmatpush1.xpose.msra.mxu0 0.0
    %709 = vmatprep.subr.mxu0 0.0
    %710 = vmatpush1.xpose.msra.mxu0 0.0
    %711 = vmatprep.subr.mxu0 0.0
    %712 = vmatpush1.xpose.msra.mxu0 0.0
    %713 = vmatprep.subr.mxu0 0.0
    %714 = vmatpush1.xpose.msra.mxu0 0.0
    %715 = vmatprep.subr.mxu0 0.0
    %716 = vmatpush1.xpose.msra.mxu0 0.0
    %717 = vmatprep.subr.mxu0 0.0
    %718 = vmatpush1.xpose.msra.mxu0 0.0
    %719 = vmatprep.subr.mxu0 0.0
    %720 = vmatpush1.xpose.msra.mxu0 0.0
    %721 = vmatprep.subr.mxu0 0.0
    %722 = vmatpush1.xpose.msra.mxu0 0.0
    %723 = vmatprep.subr.mxu0 0.0
    %724 = vmatpush1.xpose.msra.mxu0 0.0
    %725 = vmatprep.subr.mxu0 0.0
    %726 = vmatpush1.xpose.msra.mxu0 0.0
    %727 = vmatprep.subr.mxu0 0.0
    %728 = vmatpush1.xpose.msra.mxu0 0.0
    %729 = vmatprep.subr.mxu0 0.0
    %730 = vmatpush1.xpose.msra.mxu0 0.0
    %731 = vmatprep.subr.mxu0 0.0
    %732 = vmatpush1.xpose.msra.mxu0 0.0
    %733 = vmatprep.subr.mxu0 0.0
    %734 = vmatpush1.xpose.msra.mxu0 0.0
    %735 = vmatprep.subr.mxu0 0.0
    %736 = vmatpush1.xpose.msra.mxu0 0.0
    %737 = vmatprep.subr.mxu0 0.0
    %738 = vmatpush1.xpose.msra.mxu0 0.0
    %739 = vmatprep.subr.mxu0 0.0
    %740 = vmatpush1.xpose.msra.mxu0 0.0
    %741 = vmatprep.subr.mxu0 0.0
    %742 = vmatpush1.xpose.msra.mxu0 0.0
    %743 = vmatprep.mubr.f32.mxu0 0.0
    %744 = vmatmul.mubr.f32.gmra.mrb[0].mxu0 %v671
    %v745 = vpop.f32.mrb[0].mxu0
    %v746 = vadd.f32 0.0, %v745
    %v747 = vpop.f32.mrb[0].mxu0
    %748 = vmatprep.mubr.f32.mxu0 0.0
    %749 = vmatmul.mubr.f32.gmra.mrb[0].mxu0 %v673
    %v750 = vpop.f32.mrb[0].mxu0
    %v751 = vadd.f32 0.0, %v750
    %v752 = vpop.f32.mrb[0].mxu0
    %753 = vdwg.mxu0
    %v754 = vmul.f32 %v746, 0.25
    %v755 = vmul.f32 %v751, 0.25
    %v756 = vadd.f32 %v754, %v316
    %v757 = vadd.f32 %v755, %v317
    %v758 = vsel %vm466, %v756, -inf
    %759 = vmax.xlane.f32.xlu0 %v758
    %v760 = vpop.xlane.xlu0 %759
    %v761 = vsel %vm466, %v757, -inf
    %762 = vmax.xlane.f32.xlu0 %v761
    %v763 = vpop.xlane.xlu0 %762
    %v764 = vsub.f32 %v756, %v760
    %v765 = vsub.f32 %v757, %v763
    %v766 = vmul.f32 %v764, 1.442695
    %v767 = vpow.pop %v766
    %v768 = vmul.f32 %v765, 1.442695
    %v769 = vpow.pop %v768
    %v770 = vsel %vm466, %v767, 0.0
    %771 = vadd.xlane.f32.xlu0 %v770
    %v772 = vpop.xlane.xlu0 %771
    %v773 = vsel %vm466, %v769, 0.0
    %774 = vadd.xlane.f32.xlu0 %v773
    %v775 = vpop.xlane.xlu0 %774
    %v776 = vrcp.pop %v772
    %v777 = vrcp.pop %v775
    %v778 = vmul.f32 %v767, %v776
    %v779 = vmul.f32 %v769, %v777
    %780 = vrot.lane.b32.xlu0 %v448, 48
    %v781 = vpop.permute.xlu0 %780
    %782 = vrot.lane.b32.xlu0 %v453, 48
    %v783 = vpop.permute.xlu0 %782
    %v787 = vsel %vm466, %v778, 0
    %v790 = vsel %vm466, %v779, 0
    %792 = vmatprep.subr.mxu0 0.0
    %793 = vmatpush1.msra.mxu0 %v781
    %794 = vmatprep.subr.mxu0 0.0
    %795 = vmatpush1.msra.mxu0 %v783
    %796 = vmatprep.subr.mxu0 0.0
    %797 = vmatpush1.msra.mxu0 0.0
    %798 = vmatprep.subr.mxu0 0.0
    %799 = vmatpush1.msra.mxu0 0.0
    %800 = vmatprep.subr.mxu0 0.0
    %801 = vmatpush1.msra.mxu0 0.0
    %802 = vmatprep.subr.mxu0 0.0
    %803 = vmatpush1.msra.mxu0 0.0
    %804 = vmatprep.subr.mxu0 0.0
    %805 = vmatpush1.msra.mxu0 0.0
    %806 = vmatprep.subr.mxu0 0.0
    %807 = vmatpush1.msra.mxu0 0.0
    %808 = vmatprep.subr.mxu0 0.0
    %809 = vmatpush1.msra.mxu0 0.0
    %810 = vmatprep.subr.mxu0 0.0
    %811 = vmatpush1.msra.mxu0 0.0
    %812 = vmatprep.subr.mxu0 0.0
    %813 = vmatpush1.msra.mxu0 0.0
    %814 = vmatprep.subr.mxu0 0.0
    %815 = vmatpush1.msra.mxu0 0.0
    %816 = vmatprep.subr.mxu0 0.0
    %817 = vmatpush1.msra.mxu0 0.0
    %818 = vmatprep.subr.mxu0 0.0
    %819 = vmatpush1.msra.mxu0 0.0
    %820 = vmatprep.subr.mxu0 0.0
    %821 = vmatpush1.msra.mxu0 0.0
    %822 = vmatprep.subr.mxu0 0.0
    %823 = vmatpush1.msra.mxu0 0.0
    %824 = vmatprep.subr.mxu0 0.0
    %825 = vmatpush1.msra.mxu0 0.0
    %826 = vmatprep.subr.mxu0 0.0
    %827 = vmatpush1.msra.mxu0 0.0
    %828 = vmatprep.subr.mxu0 0.0
    %829 = vmatpush1.msra.mxu0 0.0
    %830 = vmatprep.subr.mxu0 0.0
    %831 = vmatpush1.msra.mxu0 0.0
    %832 = vmatprep.subr.mxu0 0.0
    %833 = vmatpush1.msra.mxu0 0.0
    %834 = vmatprep.subr.mxu0 0.0
    %835 = vmatpush1.msra.mxu0 0.0
    %836 = vmatprep.subr.mxu0 0.0
    %837 = vmatpush1.msra.mxu0 0.0
    %838 = vmatprep.subr.mxu0 0.0
    %839 = vmatpush1.msra.mxu0 0.0
    %840 = vmatprep.subr.mxu0 0.0
    %841 = vmatpush1.msra.mxu0 0.0
    %842 = vmatprep.subr.mxu0 0.0
    %843 = vmatpush1.msra.mxu0 0.0
    %844 = vmatprep.subr.mxu0 0.0
    %845 = vmatpush1.msra.mxu0 0.0
    %846 = vmatprep.subr.mxu0 0.0
    %847 = vmatpush1.msra.mxu0 0.0
    %848 = vmatprep.subr.mxu0 0.0
    %849 = vmatpush1.msra.mxu0 0.0
    %850 = vmatprep.subr.mxu0 0.0
    %851 = vmatpush1.msra.mxu0 0.0
    %852 = vmatprep.subr.mxu0 0.0
    %853 = vmatpush1.msra.mxu0 0.0
    %854 = vmatprep.subr.mxu0 0.0
    %855 = vmatpush1.msra.mxu0 0.0
    %856 = vmatprep.mubr.f32.mxu0 0.0
    %857 = vmatmul.mubr.f32.gmra.mrb[0].mxu0 %v787
    %v858 = vpop.f32.mrb[0].mxu0
    %v859 = vadd.f32 0.0, %v858
    %v860 = vpop.f32.mrb[0].mxu0
    %861 = vmatprep.mubr.f32.mxu0 0.0
    %862 = vmatmul.mubr.f32.gmra.mrb[0].mxu0 %v790
    %v863 = vpop.f32.mrb[0].mxu0
    %v864 = vadd.f32 0.0, %v863
    %v865 = vpop.f32.mrb[0].mxu0
    %866 = vdwg.mxu0
    %v868 = vsel %vm466, %v859, 0
    %v871 = vsel %vm466, %v864, 0
    %873 = vmatprep.subr.mxu0 0.0
    %874 = vmatpush1.msra.mxu0 %v458
    %875 = vmatprep.subr.mxu0 0.0
    %876 = vmatpush1.msra.mxu0 %v459
    %877 = vmatprep.subr.mxu0 0.0
    %878 = vmatpush1.msra.mxu0 0.0
    %879 = vmatprep.subr.mxu0 0.0
    %880 = vmatpush1.msra.mxu0 0.0
    %881 = vmatprep.subr.mxu0 0.0
    %882 = vmatpush1.msra.mxu0 0.0
    %883 = vmatprep.subr.mxu0 0.0
    %884 = vmatpush1.msra.mxu0 0.0
    %885 = vmatprep.subr.mxu0 0.0
    %886 = vmatpush1.msra.mxu0 0.0
    %887 = vmatprep.subr.mxu0 0.0
    %888 = vmatpush1.msra.mxu0 0.0
    %889 = vmatprep.subr.mxu0 0.0
    %890 = vmatpush1.msra.mxu0 0.0
    %891 = vmatprep.subr.mxu0 0.0
    %892 = vmatpush1.msra.mxu0 0.0
    %893 = vmatprep.subr.mxu0 0.0
    %894 = vmatpush1.msra.mxu0 0.0
    %895 = vmatprep.subr.mxu0 0.0
    %896 = vmatpush1.msra.mxu0 0.0
    %897 = vmatprep.subr.mxu0 0.0
    %898 = vmatpush1.msra.mxu0 0.0
    %899 = vmatprep.subr.mxu0 0.0
    %900 = vmatpush1.msra.mxu0 0.0
    %901 = vmatprep.subr.mxu0 0.0
    %902 = vmatpush1.msra.mxu0 0.0
    %903 = vmatprep.subr.mxu0 0.0
    %904 = vmatpush1.msra.mxu0 0.0
    %905 = vmatprep.subr.mxu0 0.0
    %906 = vmatpush1.msra.mxu0 0.0
    %907 = vmatprep.subr.mxu0 0.0
    %908 = vmatpush1.msra.mxu0 0.0
    %909 = vmatprep.subr.mxu0 0.0
    %910 = vmatpush1.msra.mxu0 0.0
    %911 = vmatprep.subr.mxu0 0.0
    %912 = vmatpush1.msra.mxu0 0.0
    %913 = vmatprep.subr.mxu0 0.0
    %914 = vmatpush1.msra.mxu0 0.0
    %915 = vmatprep.subr.mxu0 0.0
    %916 = vmatpush1.msra.mxu0 0.0
    %917 = vmatprep.subr.mxu0 0.0
    %918 = vmatpush1.msra.mxu0 0.0
    %919 = vmatprep.subr.mxu0 0.0
    %920 = vmatpush1.msra.mxu0 0.0
    %921 = vmatprep.subr.mxu0 0.0
    %922 = vmatpush1.msra.mxu0 0.0
    %923 = vmatprep.subr.mxu0 0.0
    %924 = vmatpush1.msra.mxu0 0.0
    %925 = vmatprep.subr.mxu0 0.0
    %926 = vmatpush1.msra.mxu0 0.0
    %927 = vmatprep.subr.mxu0 0.0
    %928 = vmatpush1.msra.mxu0 0.0
    %929 = vmatprep.subr.mxu0 0.0
    %930 = vmatpush1.msra.mxu0 0.0
    %931 = vmatprep.subr.mxu0 0.0
    %932 = vmatpush1.msra.mxu0 0.0
    %933 = vmatprep.subr.mxu0 0.0
    %934 = vmatpush1.msra.mxu0 0.0
    %935 = vmatprep.subr.mxu0 0.0
    %936 = vmatpush1.msra.mxu0 0.0
    %937 = vmatprep.mubr.f32.mxu0 0.0
    %938 = vmatmul.mubr.f32.gmra.mrb[0].mxu0 %v868
    %v939 = vpop.f32.mrb[0].mxu0
    %v940 = vadd.f32 0.0, %v939
    %v941 = vpop.f32.mrb[0].mxu0
    %942 = vmatprep.mubr.f32.mxu0 0.0
    %943 = vmatmul.mubr.f32.gmra.mrb[0].mxu0 %v871
    %v944 = vpop.f32.mrb[0].mxu0
    %v945 = vadd.f32 0.0, %v944
    %v946 = vpop.f32.mrb[0].mxu0
    %947 = vdwg.mxu0
    %v949 = vsel %vm466, %v655, 0
    %v952 = vsel %vm466, %v660, 0
    %954 = vmatprep.subr.mxu0 0.0
    %955 = vmatpush1.msra.mxu0 %v456
    %956 = vmatprep.subr.mxu0 0.0
    %957 = vmatpush1.msra.mxu0 %v457
    %958 = vmatprep.subr.mxu0 0.0
    %959 = vmatpush1.msra.mxu0 0.0
    %960 = vmatprep.subr.mxu0 0.0
    %961 = vmatpush1.msra.mxu0 0.0
    %962 = vmatprep.subr.mxu0 0.0
    %963 = vmatpush1.msra.mxu0 0.0
    %964 = vmatprep.subr.mxu0 0.0
    %965 = vmatpush1.msra.mxu0 0.0
    %966 = vmatprep.subr.mxu0 0.0
    %967 = vmatpush1.msra.mxu0 0.0
    %968 = vmatprep.subr.mxu0 0.0
    %969 = vmatpush1.msra.mxu0 0.0
    %970 = vmatprep.subr.mxu0 0.0
    %971 = vmatpush1.msra.mxu0 0.0
    %972 = vmatprep.subr.mxu0 0.0
    %973 = vmatpush1.msra.mxu0 0.0
    %974 = vmatprep.subr.mxu0 0.0
    %975 = vmatpush1.msra.mxu0 0.0
    %976 = vmatprep.subr.mxu0 0.0
    %977 = vmatpush1.msra.mxu0 0.0
    %978 = vmatprep.subr.mxu0 0.0
    %979 = vmatpush1.msra.mxu0 0.0
    %980 = vmatprep.subr.mxu0 0.0
    %981 = vmatpush1.msra.mxu0 0.0
    %982 = vmatprep.subr.mxu0 0.0
    %983 = vmatpush1.msra.mxu0 0.0
    %984 = vmatprep.subr.mxu0 0.0
    %985 = vmatpush1.msra.mxu0 0.0
    %986 = vmatprep.subr.mxu0 0.0
    %987 = vmatpush1.msra.mxu0 0.0
    %988 = vmatprep.subr.mxu0 0.0
    %989 = vmatpush1.msra.mxu0 0.0
    %990 = vmatprep.subr.mxu0 0.0
    %991 = vmatpush1.msra.mxu0 0.0
    %992 = vmatprep.subr.mxu0 0.0
    %993 = vmatpush1.msra.mxu0 0.0
    %994 = vmatprep.subr.mxu0 0.0
    %995 = vmatpush1.msra.mxu0 0.0
    %996 = vmatprep.subr.mxu0 0.0
    %997 = vmatpush1.msra.mxu0 0.0
    %998 = vmatprep.subr.mxu0 0.0
    %999 = vmatpush1.msra.mxu0 0.0
    %1000 = vmatprep.subr.mxu0 0.0
    %1001 = vmatpush1.msra.mxu0 0.0
    %1002 = vmatprep.subr.mxu0 0.0
    %1003 = vmatpush1.msra.mxu0 0.0
    %1004 = vmatprep.subr.mxu0 0.0
    %1005 = vmatpush1.msra.mxu0 0.0
    %1006 = vmatprep.subr.mxu0 0.0
    %1007 = vmatpush1.msra.mxu0 0.0
    %1008 = vmatprep.subr.mxu0 0.0
    %1009 = vmatpush1.msra.mxu0 0.0
    %1010 = vmatprep.subr.mxu0 0.0
    %1011 = vmatpush1.msra.mxu0 0.0
    %1012 = vmatprep.subr.mxu0 0.0
    %1013 = vmatpush1.msra.mxu0 0.0
    %1014 = vmatprep.subr.mxu0 0.0
    %1015 = vmatpush1.msra.mxu0 0.0
    %1016 = vmatprep.subr.mxu0 0.0
    %1017 = vmatpush1.msra.mxu0 0.0
    %1018 = vmatprep.mubr.f32.mxu0 0.0
    %1019 = vmatmul.mubr.f32.gmra.mrb[0].mxu0 %v949
    %v1020 = vpop.f32.mrb[0].mxu0
    %v1021 = vadd.f32 %v940, %v1020
    %v1022 = vpop.f32.mrb[0].mxu0
    %1023 = vmatprep.mubr.f32.mxu0 0.0
    %1024 = vmatmul.mubr.f32.gmra.mrb[0].mxu0 %v952
    %v1025 = vpop.f32.mrb[0].mxu0
    %v1026 = vadd.f32 %v945, %v1025
    %v1027 = vpop.f32.mrb[0].mxu0
    %1028 = vdwg.mxu0
    %v1029 = vld [vmem:[%s12] sm:$0x1]
    %v1031 = vlaneseq
    %v1032 = vshrl.u32 %v1031, 7
    %v1033 = vsub.s32 0, %v1032
    %v1034 = vrot.slane %v1029, %v1033
    %v1036 = vadd.f32 %v1021, %v1034
    %v1037 = vadd.f32 %v1026, %v1034
    %v1038 = vadd.f32 %v362, %v1036
    %v1039 = vadd.f32 %v363, %v1037
    %v1040 = vld [vmem:[%s13] sm:$0x1]
    %v1041 = vld [vmem:[%s14] sm:$0x1]
    %v1042 = vsel %vm320, %v1038, 0.0
    %1043 = vadd.xlane.f32.xlu0 %v1042
    %v1044 = vpop.xlane.xlu0 %1043
    %v1045 = vsel %vm320, %v1039, 0.0
    %1046 = vadd.xlane.f32.xlu0 %v1045
    %v1047 = vpop.xlane.xlu0 %1046
    %v1048 = vmul.f32 %v1044, %v327
    %v1049 = vmul.f32 %v1047, %v327
    %v1050 = vsub.f32 %v1038, %v1048
    %v1051 = vsub.f32 %v1039, %v1049
    %v1052 = vmul.f32 %v1050, %v1050
    %v1053 = vmul.f32 %v1051, %v1051
    %v1054 = vsel %vm320, %v1052, 0.0
    %1055 = vadd.xlane.f32.xlu0 %v1054
    %v1056 = vpop.xlane.xlu0 %1055
    %v1057 = vsel %vm320, %v1053, 0.0
    %1058 = vadd.xlane.f32.xlu0 %v1057
    %v1059 = vpop.xlane.xlu0 %1058
    %v1060 = vmul.f32 %v1056, %v327
    %v1061 = vmul.f32 %v1059, %v327
    %v1062 = vadd.f32 %v1060, 1e-12
    %v1063 = vadd.f32 %v1061, 1e-12
    %v1064 = vrsqrt.pop %v1062
    %v1065 = vrsqrt.pop %v1063
    %v1066 = vmul.f32 %v1050, %v1064
    %v1067 = vmul.f32 %v1051, %v1065
    %v1069 = vlaneseq
    %v1070 = vshrl.u32 %v1069, 7
    %v1071 = vsub.s32 0, %v1070
    %v1072 = vrot.slane %v1040, %v1071
    %v1074 = vmul.f32 %v1066, %v1072
    %v1075 = vmul.f32 %v1067, %v1072
    %v1077 = vlaneseq
    %v1078 = vshrl.u32 %v1077, 7
    %v1079 = vsub.s32 0, %v1078
    %v1080 = vrot.slane %v1041, %v1079
    %v1082 = vadd.f32 %v1074, %v1080
    %v1083 = vadd.f32 %v1075, %v1080
    %v1084 = vld [vmem:[%s15] sm:$0xff]
    %v1085 = vld [vmem:[%s15 + $0x8] sm:$0xff]
    %v1086 = vld [vmem:[%s15 + $0x10] sm:$0xff]
    %v1087 = vld [vmem:[%s15 + $0x18] sm:$0xff]
    %v1088 = vld [vmem:[%s16] sm:$0x1]
    %v1090 = vlaneseq
    %v1091 = vshrl.u32 %v1090, 7
    %v1092 = vsub.s32 0, %v1091
    %v1093 = vrot.slane %v1088, %v1092
    %v1096 = vsel %vm320, %v1082, 0
    %v1099 = vsel %vm320, %v1083, 0
    %1101 = vmatprep.subr.mxu0 0.0
    %1102 = vmatpush1.msra.mxu0 %v1084
    %1103 = vmatprep.subr.mxu0 0.0
    %1104 = vmatpush1.msra.mxu0 %v1085
    %1105 = vmatprep.subr.mxu0 0.0
    %1106 = vmatpush1.msra.mxu0 %v1086
    %1107 = vmatprep.subr.mxu0 0.0
    %1108 = vmatpush1.msra.mxu0 %v1087
    %1109 = vmatprep.subr.mxu0 0.0
    %1110 = vmatpush1.msra.mxu0 0.0
    %1111 = vmatprep.subr.mxu0 0.0
    %1112 = vmatpush1.msra.mxu0 0.0
    %1113 = vmatprep.subr.mxu0 0.0
    %1114 = vmatpush1.msra.mxu0 0.0
    %1115 = vmatprep.subr.mxu0 0.0
    %1116 = vmatpush1.msra.mxu0 0.0
    %1117 = vmatprep.subr.mxu0 0.0
    %1118 = vmatpush1.msra.mxu0 0.0
    %1119 = vmatprep.subr.mxu0 0.0
    %1120 = vmatpush1.msra.mxu0 0.0
    %1121 = vmatprep.subr.mxu0 0.0
    %1122 = vmatpush1.msra.mxu0 0.0
    %1123 = vmatprep.subr.mxu0 0.0
    %1124 = vmatpush1.msra.mxu0 0.0
    %1125 = vmatprep.subr.mxu0 0.0
    %1126 = vmatpush1.msra.mxu0 0.0
    %1127 = vmatprep.subr.mxu0 0.0
    %1128 = vmatpush1.msra.mxu0 0.0
    %1129 = vmatprep.subr.mxu0 0.0
    %1130 = vmatpush1.msra.mxu0 0.0
    %1131 = vmatprep.subr.mxu0 0.0
    %1132 = vmatpush1.msra.mxu0 0.0
    %1133 = vmatprep.subr.mxu0 0.0
    %1134 = vmatpush1.msra.mxu0 0.0
    %1135 = vmatprep.subr.mxu0 0.0
    %1136 = vmatpush1.msra.mxu0 0.0
    %1137 = vmatprep.subr.mxu0 0.0
    %1138 = vmatpush1.msra.mxu0 0.0
    %1139 = vmatprep.subr.mxu0 0.0
    %1140 = vmatpush1.msra.mxu0 0.0
    %1141 = vmatprep.subr.mxu0 0.0
    %1142 = vmatpush1.msra.mxu0 0.0
    %1143 = vmatprep.subr.mxu0 0.0
    %1144 = vmatpush1.msra.mxu0 0.0
    %1145 = vmatprep.subr.mxu0 0.0
    %1146 = vmatpush1.msra.mxu0 0.0
    %1147 = vmatprep.subr.mxu0 0.0
    %1148 = vmatpush1.msra.mxu0 0.0
    %1149 = vmatprep.subr.mxu0 0.0
    %1150 = vmatpush1.msra.mxu0 0.0
    %1151 = vmatprep.subr.mxu0 0.0
    %1152 = vmatpush1.msra.mxu0 0.0
    %1153 = vmatprep.subr.mxu0 0.0
    %1154 = vmatpush1.msra.mxu0 0.0
    %1155 = vmatprep.subr.mxu0 0.0
    %1156 = vmatpush1.msra.mxu0 0.0
    %1157 = vmatprep.subr.mxu0 0.0
    %1158 = vmatpush1.msra.mxu0 0.0
    %1159 = vmatprep.subr.mxu0 0.0
    %1160 = vmatpush1.msra.mxu0 0.0
    %1161 = vmatprep.subr.mxu0 0.0
    %1162 = vmatpush1.msra.mxu0 0.0
    %1163 = vmatprep.subr.mxu0 0.0
    %1164 = vmatpush1.msra.mxu0 0.0
    %1165 = vmatprep.mubr.f32.mxu0 0.0
    %1166 = vmatmul.mubr.f32.gmra.mrb[0].mxu0 %v1096
    %v1167 = vpop.f32.mrb[0].mxu0
    %v1168 = vadd.f32 %v1093, %v1167
    %v1169 = vpop.f32.mrb[0].mxu0
    %1170 = vmatprep.mubr.f32.mxu0 0.0
    %1171 = vmatmul.mubr.f32.gmra.mrb[0].mxu0 %v1099
    %v1172 = vpop.f32.mrb[0].mxu0
    %v1173 = vadd.f32 %v1093, %v1172
    %v1174 = vpop.f32.mrb[0].mxu0
    %1175 = vdwg.mxu0
    %v1176 = vmul.f32 %v1168, 0.5
    %v1177 = vmul.f32 %v1173, 0.5
    %v1178 = vmul.f32 %v1168, 0.044715
    %v1179 = vmul.f32 %v1173, 0.044715
    %v1180 = vmul.f32 %v1178, %v1168
    %v1181 = vmul.f32 %v1179, %v1173
    %v1182 = vmul.f32 %v1180, %v1168
    %v1183 = vmul.f32 %v1181, %v1173
    %v1184 = vadd.f32 %v1168, %v1182
    %v1185 = vadd.f32 %v1173, %v1183
    %v1186 = vmul.f32 %v1184, 0.7978846
    %v1187 = vmul.f32 %v1185, 0.7978846
    %v1188 = vtanh.pop %v1186
    %v1189 = vtanh.pop %v1187
    %v1190 = vadd.f32 %v1188, 1.0
    %v1191 = vadd.f32 %v1189, 1.0
    %v1192 = vmul.f32 %v1176, %v1190
    %v1193 = vmul.f32 %v1177, %v1191
    %v1194 = vld [vmem:[%s17] sm:$0xff]
    %v1195 = vld [vmem:[%s17 + $0x8] sm:$0xff]
    %v1196 = vld [vmem:[%s17 + $0x10] sm:$0xff]
    %v1197 = vld [vmem:[%s17 + $0x18] sm:$0xff]
    %v1198 = vld [vmem:[%s17 + $0x20] sm:$0xff]
    %v1199 = vld [vmem:[%s17 + $0x28] sm:$0xff]
    %v1200 = vld [vmem:[%s17 + $0x30] sm:$0xff]
    %v1201 = vld [vmem:[%s17 + $0x38] sm:$0xff]
    %v1202 = vld [vmem:[%s18] sm:$0x1]
    %v1204 = vlaneseq
    %v1205 = vshrl.u32 %v1204, 7
    %v1206 = vsub.s32 0, %v1205
    %v1207 = vrot.slane %v1202, %v1206
    %v1210 = vsel %vm120, %v1192, 0
    %v1213 = vsel %vm120, %v1193, 0
    %1215 = vmatprep.subr.mxu0 0.0
    %1216 = vmatpush1.msra.mxu0 %v1194
    %1217 = vmatprep.subr.mxu0 0.0
    %1218 = vmatpush1.msra.mxu0 %v1195
    %1219 = vmatprep.subr.mxu0 0.0
    %1220 = vmatpush1.msra.mxu0 %v1196
    %1221 = vmatprep.subr.mxu0 0.0
    %1222 = vmatpush1.msra.mxu0 %v1197
    %1223 = vmatprep.subr.mxu0 0.0
    %1224 = vmatpush1.msra.mxu0 %v1198
    %1225 = vmatprep.subr.mxu0 0.0
    %1226 = vmatpush1.msra.mxu0 %v1199
    %1227 = vmatprep.subr.mxu0 0.0
    %1228 = vmatpush1.msra.mxu0 %v1200
    %1229 = vmatprep.subr.mxu0 0.0
    %1230 = vmatpush1.msra.mxu0 %v1201
    %1231 = vmatprep.subr.mxu0 0.0
    %1232 = vmatpush1.msra.mxu0 0.0
    %1233 = vmatprep.subr.mxu0 0.0
    %1234 = vmatpush1.msra.mxu0 0.0
    %1235 = vmatprep.subr.mxu0 0.0
    %1236 = vmatpush1.msra.mxu0 0.0
    %1237 = vmatprep.subr.mxu0 0.0
    %1238 = vmatpush1.msra.mxu0 0.0
    %1239 = vmatprep.subr.mxu0 0.0
    %1240 = vmatpush1.msra.mxu0 0.0
    %1241 = vmatprep.subr.mxu0 0.0
    %1242 = vmatpush1.msra.mxu0 0.0
    %1243 = vmatprep.subr.mxu0 0.0
    %1244 = vmatpush1.msra.mxu0 0.0
    %1245 = vmatprep.subr.mxu0 0.0
    %1246 = vmatpush1.msra.mxu0 0.0
    %1247 = vmatprep.subr.mxu0 0.0
    %1248 = vmatpush1.msra.mxu0 0.0
    %1249 = vmatprep.subr.mxu0 0.0
    %1250 = vmatpush1.msra.mxu0 0.0
    %1251 = vmatprep.subr.mxu0 0.0
    %1252 = vmatpush1.msra.mxu0 0.0
    %1253 = vmatprep.subr.mxu0 0.0
    %1254 = vmatpush1.msra.mxu0 0.0
    %1255 = vmatprep.subr.mxu0 0.0
    %1256 = vmatpush1.msra.mxu0 0.0
    %1257 = vmatprep.subr.mxu0 0.0
    %1258 = vmatpush1.msra.mxu0 0.0
    %1259 = vmatprep.subr.mxu0 0.0
    %1260 = vmatpush1.msra.mxu0 0.0
    %1261 = vmatprep.subr.mxu0 0.0
    %1262 = vmatpush1.msra.mxu0 0.0
    %1263 = vmatprep.subr.mxu0 0.0
    %1264 = vmatpush1.msra.mxu0 0.0
    %1265 = vmatprep.subr.mxu0 0.0
    %1266 = vmatpush1.msra.mxu0 0.0
    %1267 = vmatprep.subr.mxu0 0.0
    %1268 = vmatpush1.msra.mxu0 0.0
    %1269 = vmatprep.subr.mxu0 0.0
    %1270 = vmatpush1.msra.mxu0 0.0
    %1271 = vmatprep.subr.mxu0 0.0
    %1272 = vmatpush1.msra.mxu0 0.0
    %1273 = vmatprep.subr.mxu0 0.0
    %1274 = vmatpush1.msra.mxu0 0.0
    %1275 = vmatprep.subr.mxu0 0.0
    %1276 = vmatpush1.msra.mxu0 0.0
    %1277 = vmatprep.subr.mxu0 0.0
    %1278 = vmatpush1.msra.mxu0 0.0
    %1279 = vmatprep.mubr.f32.mxu0 0.0
    %1280 = vmatmul.mubr.f32.gmra.mrb[0].mxu0 %v1210
    %v1281 = vpop.f32.mrb[0].mxu0
    %v1282 = vadd.f32 %v1207, %v1281
    %v1283 = vpop.f32.mrb[0].mxu0
    %1284 = vmatprep.mubr.f32.mxu0 0.0
    %1285 = vmatmul.mubr.f32.gmra.mrb[0].mxu0 %v1213
    %v1286 = vpop.f32.mrb[0].mxu0
    %v1287 = vadd.f32 %v1207, %v1286
    %v1288 = vpop.f32.mrb[0].mxu0
    %1289 = vdwg.mxu0
    %v1290 = vadd.f32 %v1082, %v1282
    %v1291 = vadd.f32 %v1083, %v1287
    %v1292 = vld [vmem:[%s19] sm:$0x1]
    %v1293 = vld [vmem:[%s20] sm:$0x1]
    %v1294 = vsel %vm320, %v1290, 0.0
    %1295 = vadd.xlane.f32.xlu0 %v1294
    %v1296 = vpop.xlane.xlu0 %1295
    %v1297 = vsel %vm320, %v1291, 0.0
    %1298 = vadd.xlane.f32.xlu0 %v1297
    %v1299 = vpop.xlane.xlu0 %1298
    %v1300 = vmul.f32 %v1296, %v327
    %v1301 = vmul.f32 %v1299, %v327
    %v1302 = vsub.f32 %v1290, %v1300
    %v1303 = vsub.f32 %v1291, %v1301
    %v1304 = vmul.f32 %v1302, %v1302
    %v1305 = vmul.f32 %v1303, %v1303
    %v1306 = vsel %vm320, %v1304, 0.0
    %1307 = vadd.xlane.f32.xlu0 %v1306
    %v1308 = vpop.xlane.xlu0 %1307
    %v1309 = vsel %vm320, %v1305, 0.0
    %1310 = vadd.xlane.f32.xlu0 %v1309
    %v1311 = vpop.xlane.xlu0 %1310
    %v1312 = vmul.f32 %v1308, %v327
    %v1313 = vmul.f32 %v1311, %v327
    %v1314 = vadd.f32 %v1312, 1e-12
    %v1315 = vadd.f32 %v1313, 1e-12
    %v1316 = vrsqrt.pop %v1314
    %v1317 = vrsqrt.pop %v1315
    %v1318 = vmul.f32 %v1302, %v1316
    %v1319 = vmul.f32 %v1303, %v1317
    %v1321 = vlaneseq
    %v1322 = vshrl.u32 %v1321, 7
    %v1323 = vsub.s32 0, %v1322
    %v1324 = vrot.slane %v1292, %v1323
    %v1326 = vmul.f32 %v1318, %v1324
    %v1327 = vmul.f32 %v1319, %v1324
    %v1329 = vlaneseq
    %v1330 = vshrl.u32 %v1329, 7
    %v1331 = vsub.s32 0, %v1330
    %v1332 = vrot.slane %v1293, %v1331
    %v1334 = vadd.f32 %v1326, %v1332
    %v1335 = vadd.f32 %v1327, %v1332
    %s1336 = scalar_lea.vmem %s9, 32
    %v1337 = vld [vmem:[%s1336] sm:$0xff]
    %v1338 = vld [vmem:[%s1336 + $0x8] sm:$0xff]
    %v1339 = vld [vmem:[%s1336 + $0x10] sm:$0xff]
    %v1340 = vld [vmem:[%s1336 + $0x18] sm:$0xff]
    %s1341 = scalar_lea.vmem %s10, 1
    %v1342 = vld [vmem:[%s1341] sm:$0x1]
    %v1344 = vlaneseq
    %v1345 = vshrl.u32 %v1344, 7
    %v1346 = vsub.s32 0, %v1345
    %v1347 = vrot.slane %v1342, %v1346
    %v1350 = vsel %vm320, %v1334, 0
    %v1353 = vsel %vm320, %v1335, 0
    %1355 = vmatprep.subr.mxu0 0.0
    %1356 = vmatpush1.msra.mxu0 %v1337
    %1357 = vmatprep.subr.mxu0 0.0
    %1358 = vmatpush1.msra.mxu0 %v1338
    %1359 = vmatprep.subr.mxu0 0.0
    %1360 = vmatpush1.msra.mxu0 %v1339
    %1361 = vmatprep.subr.mxu0 0.0
    %1362 = vmatpush1.msra.mxu0 %v1340
    %1363 = vmatprep.subr.mxu0 0.0
    %1364 = vmatpush1.msra.mxu0 0.0
    %1365 = vmatprep.subr.mxu0 0.0
    %1366 = vmatpush1.msra.mxu0 0.0
    %1367 = vmatprep.subr.mxu0 0.0
    %1368 = vmatpush1.msra.mxu0 0.0
    %1369 = vmatprep.subr.mxu0 0.0
    %1370 = vmatpush1.msra.mxu0 0.0
    %1371 = vmatprep.subr.mxu0 0.0
    %1372 = vmatpush1.msra.mxu0 0.0
    %1373 = vmatprep.subr.mxu0 0.0
    %1374 = vmatpush1.msra.mxu0 0.0
    %1375 = vmatprep.subr.mxu0 0.0
    %1376 = vmatpush1.msra.mxu0 0.0
    %1377 = vmatprep.subr.mxu0 0.0
    %1378 = vmatpush1.msra.mxu0 0.0
    %1379 = vmatprep.subr.mxu0 0.0
    %1380 = vmatpush1.msra.mxu0 0.0
    %1381 = vmatprep.subr.mxu0 0.0
    %1382 = vmatpush1.msra.mxu0 0.0
    %1383 = vmatprep.subr.mxu0 0.0
    %1384 = vmatpush1.msra.mxu0 0.0
    %1385 = vmatprep.subr.mxu0 0.0
    %1386 = vmatpush1.msra.mxu0 0.0
    %1387 = vmatprep.subr.mxu0 0.0
    %1388 = vmatpush1.msra.mxu0 0.0
    %1389 = vmatprep.subr.mxu0 0.0
    %1390 = vmatpush1.msra.mxu0 0.0
    %1391 = vmatprep.subr.mxu0 0.0
    %1392 = vmatpush1.msra.mxu0 0.0
    %1393 = vmatprep.subr.mxu0 0.0
    %1394 = vmatpush1.msra.mxu0 0.0
    %1395 = vmatprep.subr.mxu0 0.0
    %1396 = vmatpush1.msra.mxu0 0.0
    %1397 = vmatprep.subr.mxu0 0.0
    %1398 = vmatpush1.msra.mxu0 0.0
    %1399 = vmatprep.subr.mxu0 0.0
    %1400 = vmatpush1.msra.mxu0 0.0
    %1401 = vmatprep.subr.mxu0 0.0
    %1402 = vmatpush1.msra.mxu0 0.0
    %1403 = vmatprep.subr.mxu0 0.0
    %1404 = vmatpush1.msra.mxu0 0.0
    %1405 = vmatprep.subr.mxu0 0.0
    %1406 = vmatpush1.msra.mxu0 0.0
    %1407 = vmatprep.subr.mxu0 0.0
    %1408 = vmatpush1.msra.mxu0 0.0
    %1409 = vmatprep.subr.mxu0 0.0
    %1410 = vmatpush1.msra.mxu0 0.0
    %1411 = vmatprep.subr.mxu0 0.0
    %1412 = vmatpush1.msra.mxu0 0.0
    %1413 = vmatprep.subr.mxu0 0.0
    %1414 = vmatpush1.msra.mxu0 0.0
    %1415 = vmatprep.subr.mxu0 0.0
    %1416 = vmatpush1.msra.mxu0 0.0
    %1417 = vmatprep.subr.mxu0 0.0
    %1418 = vmatpush1.msra.mxu0 0.0
    %1419 = vmatprep.mubr.f32.mxu0 0.0
    %1420 = vmatmul.mubr.f32.gmra.mrb[0].mxu0 %v1350
    %v1421 = vpop.f32.mrb[0].mxu0
    %v1422 = vadd.f32 %v1347, %v1421
    %v1423 = vpop.f32.mrb[0].mxu0
    %1424 = vmatprep.mubr.f32.mxu0 0.0
    %1425 = vmatmul.mubr.f32.gmra.mrb[0].mxu0 %v1353
    %v1426 = vpop.f32.mrb[0].mxu0
    %v1427 = vadd.f32 %v1347, %v1426
    %v1428 = vpop.f32.mrb[0].mxu0
    %1429 = vdwg.mxu0
    %s1430 = scalar_lea.vmem %s11, 32
    %v1431 = vld [vmem:[%s1430] sm:$0xff]
    %v1432 = vld [vmem:[%s1430 + $0x8] sm:$0xff]
    %v1433 = vld [vmem:[%s1430 + $0x10] sm:$0xff]
    %v1434 = vld [vmem:[%s1430 + $0x18] sm:$0xff]
    %1437 = vrot.lane.b32.xlu0 %v1422, 96
    %v1438 = vpop.permute.xlu0 %1437
    %1439 = vrot.lane.b32.xlu0 %v1427, 96
    %v1440 = vpop.permute.xlu0 %1439
    %v1441 = vsel %vm466, %v1422, 0
    %v1443 = vsel %vm466, %v1427, 0
    %v1445 = vsel %vm466, %v1438, 0
    %v1447 = vsel %vm466, %v1440, 0
    %1449 = vmatprep.subr.mxu0 0.0
    %1450 = vmatpush1.xpose.msra.mxu0 %v1445
    %1451 = vmatprep.subr.mxu0 0.0
    %1452 = vmatpush1.xpose.msra.mxu0 %v1447
    %1453 = vmatprep.subr.mxu0 0.0
    %1454 = vmatpush1.xpose.msra.mxu0 0.0
    %1455 = vmatprep.subr.mxu0 0.0
    %1456 = vmatpush1.xpose.msra.mxu0 0.0
    %1457 = vmatprep.subr.mxu0 0.0
    %1458 = vmatpush1.xpose.msra.mxu0 0.0
    %1459 = vmatprep.subr.mxu0 0.0
    %1460 = vmatpush1.xpose.msra.mxu0 0.0
    %1461 = vmatprep.subr.mxu0 0.0
    %1462 = vmatpush1.xpose.msra.mxu0 0.0
    %1463 = vmatprep.subr.mxu0 0.0
    %1464 = vmatpush1.xpose.msra.mxu0 0.0
    %1465 = vmatprep.subr.mxu0 0.0
    %1466 = vmatpush1.xpose.msra.mxu0 0.0
    %1467 = vmatprep.subr.mxu0 0.0
    %1468 = vmatpush1.xpose.msra.mxu0 0.0
    %1469 = vmatprep.subr.mxu0 0.0
    %1470 = vmatpush1.xpose.msra.mxu0 0.0
    %1471 = vmatprep.subr.mxu0 0.0
    %1472 = vmatpush1.xpose.msra.mxu0 0.0
    %1473 = vmatprep.subr.mxu0 0.0
    %1474 = vmatpush1.xpose.msra.mxu0 0.0
    %1475 = vmatprep.subr.mxu0 0.0
    %1476 = vmatpush1.xpose.msra.mxu0 0.0
    %1477 = vmatprep.subr.mxu0 0.0
    %1478 = vmatpush1.xpose.msra.mxu0 0.0
    %1479 = vmatprep.subr.mxu0 0.0
    %1480 = vmatpush1.xpose.msra.mxu0 0.0
    %1481 = vmatprep.subr.mxu0 0.0
    %1482 = vmatpush1.xpose.msra.mxu0 0.0
    %1483 = vmatprep.subr.mxu0 0.0
    %1484 = vmatpush1.xpose.msra.mxu0 0.0
    %1485 = vmatprep.subr.mxu0 0.0
    %1486 = vmatpush1.xpose.msra.mxu0 0.0
    %1487 = vmatprep.subr.mxu0 0.0
    %1488 = vmatpush1.xpose.msra.mxu0 0.0
    %1489 = vmatprep.subr.mxu0 0.0
    %1490 = vmatpush1.xpose.msra.mxu0 0.0
    %1491 = vmatprep.subr.mxu0 0.0
    %1492 = vmatpush1.xpose.msra.mxu0 0.0
    %1493 = vmatprep.subr.mxu0 0.0
    %1494 = vmatpush1.xpose.msra.mxu0 0.0
    %1495 = vmatprep.subr.mxu0 0.0
    %1496 = vmatpush1.xpose.msra.mxu0 0.0
    %1497 = vmatprep.subr.mxu0 0.0
    %1498 = vmatpush1.xpose.msra.mxu0 0.0
    %1499 = vmatprep.subr.mxu0 0.0
    %1500 = vmatpush1.xpose.msra.mxu0 0.0
    %1501 = vmatprep.subr.mxu0 0.0
    %1502 = vmatpush1.xpose.msra.mxu0 0.0
    %1503 = vmatprep.subr.mxu0 0.0
    %1504 = vmatpush1.xpose.msra.mxu0 0.0
    %1505 = vmatprep.subr.mxu0 0.0
    %1506 = vmatpush1.xpose.msra.mxu0 0.0
    %1507 = vmatprep.subr.mxu0 0.0
    %1508 = vmatpush1.xpose.msra.mxu0 0.0
    %1509 = vmatprep.subr.mxu0 0.0
    %1510 = vmatpush1.xpose.msra.mxu0 0.0
    %1511 = vmatprep.subr.mxu0 0.0
    %1512 = vmatpush1.xpose.msra.mxu0 0.0
    %1513 = vmatprep.mubr.f32.mxu0 0.0
    %1514 = vmatmul.mubr.f32.gmra.mrb[0].mxu0 %v1441
    %v1515 = vpop.f32.mrb[0].mxu0
    %v1516 = vadd.f32 0.0, %v1515
    %v1517 = vpop.f32.mrb[0].mxu0
    %1518 = vmatprep.mubr.f32.mxu0 0.0
    %1519 = vmatmul.mubr.f32.gmra.mrb[0].mxu0 %v1443
    %v1520 = vpop.f32.mrb[0].mxu0
    %v1521 = vadd.f32 0.0, %v1520
    %v1522 = vpop.f32.mrb[0].mxu0
    %1523 = vdwg.mxu0
    %v1524 = vmul.f32 %v1516, 0.25
    %v1525 = vmul.f32 %v1521, 0.25
    %v1526 = vadd.f32 %v1524, %v316
    %v1527 = vadd.f32 %v1525, %v317
    %v1528 = vsel %vm466, %v1526, -inf
    %1529 = vmax.xlane.f32.xlu0 %v1528
    %v1530 = vpop.xlane.xlu0 %1529
    %v1531 = vsel %vm466, %v1527, -inf
    %1532 = vmax.xlane.f32.xlu0 %v1531
    %v1533 = vpop.xlane.xlu0 %1532
    %v1534 = vsub.f32 %v1526, %v1530
    %v1535 = vsub.f32 %v1527, %v1533
    %v1536 = vmul.f32 %v1534, 1.442695
    %v1537 = vpow.pop %v1536
    %v1538 = vmul.f32 %v1535, 1.442695
    %v1539 = vpow.pop %v1538
    %v1540 = vsel %vm466, %v1537, 0.0
    %1541 = vadd.xlane.f32.xlu0 %v1540
    %v1542 = vpop.xlane.xlu0 %1541
    %v1543 = vsel %vm466, %v1539, 0.0
    %1544 = vadd.xlane.f32.xlu0 %v1543
    %v1545 = vpop.xlane.xlu0 %1544
    %v1546 = vrcp.pop %v1542
    %v1547 = vrcp.pop %v1545
    %v1548 = vmul.f32 %v1537, %v1546
    %v1549 = vmul.f32 %v1539, %v1547
    %1550 = vrot.lane.b32.xlu0 %v1422, 64
    %v1551 = vpop.permute.xlu0 %1550
    %1552 = vrot.lane.b32.xlu0 %v1427, 64
    %v1553 = vpop.permute.xlu0 %1552
    %v1557 = vsel %vm466, %v1548, 0
    %v1560 = vsel %vm466, %v1549, 0
    %1562 = vmatprep.subr.mxu0 0.0
    %1563 = vmatpush1.msra.mxu0 %v1551
    %1564 = vmatprep.subr.mxu0 0.0
    %1565 = vmatpush1.msra.mxu0 %v1553
    %1566 = vmatprep.subr.mxu0 0.0
    %1567 = vmatpush1.msra.mxu0 0.0
    %1568 = vmatprep.subr.mxu0 0.0
    %1569 = vmatpush1.msra.mxu0 0.0
    %1570 = vmatprep.subr.mxu0 0.0
    %1571 = vmatpush1.msra.mxu0 0.0
    %1572 = vmatprep.subr.mxu0 0.0
    %1573 = vmatpush1.msra.mxu0 0.0
    %1574 = vmatprep.subr.mxu0 0.0
    %1575 = vmatpush1.msra.mxu0 0.0
    %1576 = vmatprep.subr.mxu0 0.0
    %1577 = vmatpush1.msra.mxu0 0.0
    %1578 = vmatprep.subr.mxu0 0.0
    %1579 = vmatpush1.msra.mxu0 0.0
    %1580 = vmatprep.subr.mxu0 0.0
    %1581 = vmatpush1.msra.mxu0 0.0
    %1582 = vmatprep.subr.mxu0 0.0
    %1583 = vmatpush1.msra.mxu0 0.0
    %1584 = vmatprep.subr.mxu0 0.0
    %1585 = vmatpush1.msra.mxu0 0.0
    %1586 = vmatprep.subr.mxu0 0.0
    %1587 = vmatpush1.msra.mxu0 0.0
    %1588 = vmatprep.subr.mxu0 0.0
    %1589 = vmatpush1.msra.mxu0 0.0
    %1590 = vmatprep.subr.mxu0 0.0
    %1591 = vmatpush1.msra.mxu0 0.0
    %1592 = vmatprep.subr.mxu0 0.0
    %1593 = vmatpush1.msra.mxu0 0.0
    %1594 = vmatprep.subr.mxu0 0.0
    %1595 = vmatpush1.msra.mxu0 0.0
    %1596 = vmatprep.subr.mxu0 0.0
    %1597 = vmatpush1.msra.mxu0 0.0
    %1598 = vmatprep.subr.mxu0 0.0
    %1599 = vmatpush1.msra.mxu0 0.0
    %1600 = vmatprep.subr.mxu0 0.0
    %1601 = vmatpush1.msra.mxu0 0.0
    %1602 = vmatprep.subr.mxu0 0.0
    %1603 = vmatpush1.msra.mxu0 0.0
    %1604 = vmatprep.subr.mxu0 0.0
    %1605 = vmatpush1.msra.mxu0 0.0
    %1606 = vmatprep.subr.mxu0 0.0
    %1607 = vmatpush1.msra.mxu0 0.0
    %1608 = vmatprep.subr.mxu0 0.0
    %1609 = vmatpush1.msra.mxu0 0.0
    %1610 = vmatprep.subr.mxu0 0.0
    %1611 = vmatpush1.msra.mxu0 0.0
    %1612 = vmatprep.subr.mxu0 0.0
    %1613 = vmatpush1.msra.mxu0 0.0
    %1614 = vmatprep.subr.mxu0 0.0
    %1615 = vmatpush1.msra.mxu0 0.0
    %1616 = vmatprep.subr.mxu0 0.0
    %1617 = vmatpush1.msra.mxu0 0.0
    %1618 = vmatprep.subr.mxu0 0.0
    %1619 = vmatpush1.msra.mxu0 0.0
    %1620 = vmatprep.subr.mxu0 0.0
    %1621 = vmatpush1.msra.mxu0 0.0
    %1622 = vmatprep.subr.mxu0 0.0
    %1623 = vmatpush1.msra.mxu0 0.0
    %1624 = vmatprep.subr.mxu0 0.0
    %1625 = vmatpush1.msra.mxu0 0.0
    %1626 = vmatprep.mubr.f32.mxu0 0.0
    %1627 = vmatmul.mubr.f32.gmra.mrb[0].mxu0 %v1557
    %v1628 = vpop.f32.mrb[0].mxu0
    %v1629 = vadd.f32 0.0, %v1628
    %v1630 = vpop.f32.mrb[0].mxu0
    %1631 = vmatprep.mubr.f32.mxu0 0.0
    %1632 = vmatmul.mubr.f32.gmra.mrb[0].mxu0 %v1560
    %v1633 = vpop.f32.mrb[0].mxu0
    %v1634 = vadd.f32 0.0, %v1633
    %v1635 = vpop.f32.mrb[0].mxu0
    %1636 = vdwg.mxu0
    %1637 = vrot.lane.b32.xlu0 %v1422, 112
    %v1638 = vpop.permute.xlu0 %1637
    %1639 = vrot.lane.b32.xlu0 %v1427, 112
    %v1640 = vpop.permute.xlu0 %1639
    %1641 = vrot.lane.b32.xlu0 %v1422, 80
    %v1642 = vpop.permute.xlu0 %1641
    %1643 = vrot.lane.b32.xlu0 %v1427, 80
    %v1644 = vpop.permute.xlu0 %1643
    %v1645 = vsel %vm466, %v1638, 0
    %v1647 = vsel %vm466, %v1640, 0
    %v1649 = vsel %vm466, %v1642, 0
    %v1651 = vsel %vm466, %v1644, 0
    %1653 = vmatprep.subr.mxu0 0.0
    %1654 = vmatpush1.xpose.msra.mxu0 %v1649
    %1655 = vmatprep.subr.mxu0 0.0
    %1656 = vmatpush1.xpose.msra.mxu0 %v1651
    %1657 = vmatprep.subr.mxu0 0.0
    %1658 = vmatpush1.xpose.msra.mxu0 0.0
    %1659 = vmatprep.subr.mxu0 0.0
    %1660 = vmatpush1.xpose.msra.mxu0 0.0
    %1661 = vmatprep.subr.mxu0 0.0
    %1662 = vmatpush1.xpose.msra.mxu0 0.0
    %1663 = vmatprep.subr.mxu0 0.0
    %1664 = vmatpush1.xpose.msra.mxu0 0.0
    %1665 = vmatprep.subr.mxu0 0.0
    %1666 = vmatpush1.xpose.msra.mxu0 0.0
    %1667 = vmatprep.subr.mxu0 0.0
    %1668 = vmatpush1.xpose.msra.mxu0 0.0
    %1669 = vmatprep.subr.mxu0 0.0
    %1670 = vmatpush1.xpose.msra.mxu0 0.0
    %1671 = vmatprep.subr.mxu0 0.0
    %1672 = vmatpush1.xpose.msra.mxu0 0.0
    %1673 = vmatprep.subr.mxu0 0.0
    %1674 = vmatpush1.xpose.msra.mxu0 0.0
    %1675 = vmatprep.subr.mxu0 0.0
    %1676 = vmatpush1.xpose.msra.mxu0 0.0
    %1677 = vmatprep.subr.mxu0 0.0
    %1678 = vmatpush1.xpose.msra.mxu0 0.0
    %1679 = vmatprep.subr.mxu0 0.0
    %1680 = vmatpush1.xpose.msra.mxu0 0.0
    %1681 = vmatprep.subr.mxu0 0.0
    %1682 = vmatpush1.xpose.msra.mxu0 0.0
    %1683 = vmatprep.subr.mxu0 0.0
    %1684 = vmatpush1.xpose.msra.mxu0 0.0
    %1685 = vmatprep.subr.mxu0 0.0
    %1686 = vmatpush1.xpose.msra.mxu0 0.0
    %1687 = vmatprep.subr.mxu0 0.0
    %1688 = vmatpush1.xpose.msra.mxu0 0.0
    %1689 = vmatprep.subr.mxu0 0.0
    %1690 = vmatpush1.xpose.msra.mxu0 0.0
    %1691 = vmatprep.subr.mxu0 0.0
    %1692 = vmatpush1.xpose.msra.mxu0 0.0
    %1693 = vmatprep.subr.mxu0 0.0
    %1694 = vmatpush1.xpose.msra.mxu0 0.0
    %1695 = vmatprep.subr.mxu0 0.0
    %1696 = vmatpush1.xpose.msra.mxu0 0.0
    %1697 = vmatprep.subr.mxu0 0.0
    %1698 = vmatpush1.xpose.msra.mxu0 0.0
    %1699 = vmatprep.subr.mxu0 0.0
    %1700 = vmatpush1.xpose.msra.mxu0 0.0
    %1701 = vmatprep.subr.mxu0 0.0
    %1702 = vmatpush1.xpose.msra.mxu0 0.0
    %1703 = vmatprep.subr.mxu0 0.0
    %1704 = vmatpush1.xpose.msra.mxu0 0.0
    %1705 = vmatprep.subr.mxu0 0.0
    %1706 = vmatpush1.xpose.msra.mxu0 0.0
    %1707 = vmatprep.subr.mxu0 0.0
    %1708 = vmatpush1.xpose.msra.mxu0 0.0
    %1709 = vmatprep.subr.mxu0 0.0
    %1710 = vmatpush1.xpose.msra.mxu0 0.0
    %1711 = vmatprep.subr.mxu0 0.0
    %1712 = vmatpush1.xpose.msra.mxu0 0.0
    %1713 = vmatprep.subr.mxu0 0.0
    %1714 = vmatpush1.xpose.msra.mxu0 0.0
    %1715 = vmatprep.subr.mxu0 0.0
    %1716 = vmatpush1.xpose.msra.mxu0 0.0
    %1717 = vmatprep.mubr.f32.mxu0 0.0
    %1718 = vmatmul.mubr.f32.gmra.mrb[0].mxu0 %v1645
    %v1719 = vpop.f32.mrb[0].mxu0
    %v1720 = vadd.f32 0.0, %v1719
    %v1721 = vpop.f32.mrb[0].mxu0
    %1722 = vmatprep.mubr.f32.mxu0 0.0
    %1723 = vmatmul.mubr.f32.gmra.mrb[0].mxu0 %v1647
    %v1724 = vpop.f32.mrb[0].mxu0
    %v1725 = vadd.f32 0.0, %v1724
    %v1726 = vpop.f32.mrb[0].mxu0
    %1727 = vdwg.mxu0
    %v1728 = vmul.f32 %v1720, 0.25
    %v1729 = vmul.f32 %v1725, 0.25
    %v1730 = vadd.f32 %v1728, %v316
    %v1731 = vadd.f32 %v1729, %v317
    %v1732 = vsel %vm466, %v1730, -inf
    %1733 = vmax.xlane.f32.xlu0 %v1732
    %v1734 = vpop.xlane.xlu0 %1733
    %v1735 = vsel %vm466, %v1731, -inf
    %1736 = vmax.xlane.f32.xlu0 %v1735
    %v1737 = vpop.xlane.xlu0 %1736
    %v1738 = vsub.f32 %v1730, %v1734
    %v1739 = vsub.f32 %v1731, %v1737
    %v1740 = vmul.f32 %v1738, 1.442695
    %v1741 = vpow.pop %v1740
    %v1742 = vmul.f32 %v1739, 1.442695
    %v1743 = vpow.pop %v1742
    %v1744 = vsel %vm466, %v1741, 0.0
    %1745 = vadd.xlane.f32.xlu0 %v1744
    %v1746 = vpop.xlane.xlu0 %1745
    %v1747 = vsel %vm466, %v1743, 0.0
    %1748 = vadd.xlane.f32.xlu0 %v1747
    %v1749 = vpop.xlane.xlu0 %1748
    %v1750 = vrcp.pop %v1746
    %v1751 = vrcp.pop %v1749
    %v1752 = vmul.f32 %v1741, %v1750
    %v1753 = vmul.f32 %v1743, %v1751
    %1754 = vrot.lane.b32.xlu0 %v1422, 48
    %v1755 = vpop.permute.xlu0 %1754
    %1756 = vrot.lane.b32.xlu0 %v1427, 48
    %v1757 = vpop.permute.xlu0 %1756
    %v1761 = vsel %vm466, %v1752, 0
    %v1764 = vsel %vm466, %v1753, 0
    %1766 = vmatprep.subr.mxu0 0.0
    %1767 = vmatpush1.msra.mxu0 %v1755
    %1768 = vmatprep.subr.mxu0 0.0
    %1769 = vmatpush1.msra.mxu0 %v1757
    %1770 = vmatprep.subr.mxu0 0.0
    %1771 = vmatpush1.msra.mxu0 0.0
    %1772 = vmatprep.subr.mxu0 0.0
    %1773 = vmatpush1.msra.mxu0 0.0
    %1774 = vmatprep.subr.mxu0 0.0
    %1775 = vmatpush1.msra.mxu0 0.0
    %1776 = vmatprep.subr.mxu0 0.0
    %1777 = vmatpush1.msra.mxu0 0.0
    %1778 = vmatprep.subr.mxu0 0.0
    %1779 = vmatpush1.msra.mxu0 0.0
    %1780 = vmatprep.subr.mxu0 0.0
    %1781 = vmatpush1.msra.mxu0 0.0
    %1782 = vmatprep.subr.mxu0 0.0
    %1783 = vmatpush1.msra.mxu0 0.0
    %1784 = vmatprep.subr.mxu0 0.0
    %1785 = vmatpush1.msra.mxu0 0.0
    %1786 = vmatprep.subr.mxu0 0.0
    %1787 = vmatpush1.msra.mxu0 0.0
    %1788 = vmatprep.subr.mxu0 0.0
    %1789 = vmatpush1.msra.mxu0 0.0
    %1790 = vmatprep.subr.mxu0 0.0
    %1791 = vmatpush1.msra.mxu0 0.0
    %1792 = vmatprep.subr.mxu0 0.0
    %1793 = vmatpush1.msra.mxu0 0.0
    %1794 = vmatprep.subr.mxu0 0.0
    %1795 = vmatpush1.msra.mxu0 0.0
    %1796 = vmatprep.subr.mxu0 0.0
    %1797 = vmatpush1.msra.mxu0 0.0
    %1798 = vmatprep.subr.mxu0 0.0
    %1799 = vmatpush1.msra.mxu0 0.0
    %1800 = vmatprep.subr.mxu0 0.0
    %1801 = vmatpush1.msra.mxu0 0.0
    %1802 = vmatprep.subr.mxu0 0.0
    %1803 = vmatpush1.msra.mxu0 0.0
    %1804 = vmatprep.subr.mxu0 0.0
    %1805 = vmatpush1.msra.mxu0 0.0
    %1806 = vmatprep.subr.mxu0 0.0
    %1807 = vmatpush1.msra.mxu0 0.0
    %1808 = vmatprep.subr.mxu0 0.0
    %1809 = vmatpush1.msra.mxu0 0.0
    %1810 = vmatprep.subr.mxu0 0.0
    %1811 = vmatpush1.msra.mxu0 0.0
    %1812 = vmatprep.subr.mxu0 0.0
    %1813 = vmatpush1.msra.mxu0 0.0
    %1814 = vmatprep.subr.mxu0 0.0
    %1815 = vmatpush1.msra.mxu0 0.0
    %1816 = vmatprep.subr.mxu0 0.0
    %1817 = vmatpush1.msra.mxu0 0.0
    %1818 = vmatprep.subr.mxu0 0.0
    %1819 = vmatpush1.msra.mxu0 0.0
    %1820 = vmatprep.subr.mxu0 0.0
    %1821 = vmatpush1.msra.mxu0 0.0
    %1822 = vmatprep.subr.mxu0 0.0
    %1823 = vmatpush1.msra.mxu0 0.0
    %1824 = vmatprep.subr.mxu0 0.0
    %1825 = vmatpush1.msra.mxu0 0.0
    %1826 = vmatprep.subr.mxu0 0.0
    %1827 = vmatpush1.msra.mxu0 0.0
    %1828 = vmatprep.subr.mxu0 0.0
    %1829 = vmatpush1.msra.mxu0 0.0
    %1830 = vmatprep.mubr.f32.mxu0 0.0
    %1831 = vmatmul.mubr.f32.gmra.mrb[0].mxu0 %v1761
    %v1832 = vpop.f32.mrb[0].mxu0
    %v1833 = vadd.f32 0.0, %v1832
    %v1834 = vpop.f32.mrb[0].mxu0
    %1835 = vmatprep.mubr.f32.mxu0 0.0
    %1836 = vmatmul.mubr.f32.gmra.mrb[0].mxu0 %v1764
    %v1837 = vpop.f32.mrb[0].mxu0
    %v1838 = vadd.f32 0.0, %v1837
    %v1839 = vpop.f32.mrb[0].mxu0
    %1840 = vdwg.mxu0
    %v1842 = vsel %vm466, %v1833, 0
    %v1845 = vsel %vm466, %v1838, 0
    %1847 = vmatprep.subr.mxu0 0.0
    %1848 = vmatpush1.msra.mxu0 %v1433
    %1849 = vmatprep.subr.mxu0 0.0
    %1850 = vmatpush1.msra.mxu0 %v1434
    %1851 = vmatprep.subr.mxu0 0.0
    %1852 = vmatpush1.msra.mxu0 0.0
    %1853 = vmatprep.subr.mxu0 0.0
    %1854 = vmatpush1.msra.mxu0 0.0
    %1855 = vmatprep.subr.mxu0 0.0
    %1856 = vmatpush1.msra.mxu0 0.0
    %1857 = vmatprep.subr.mxu0 0.0
    %1858 = vmatpush1.msra.mxu0 0.0
    %1859 = vmatprep.subr.mxu0 0.0
    %1860 = vmatpush1.msra.mxu0 0.0
    %1861 = vmatprep.subr.mxu0 0.0
    %1862 = vmatpush1.msra.mxu0 0.0
    %1863 = vmatprep.subr.mxu0 0.0
    %1864 = vmatpush1.msra.mxu0 0.0
    %1865 = vmatprep.subr.mxu0 0.0
    %1866 = vmatpush1.msra.mxu0 0.0
    %1867 = vmatprep.subr.mxu0 0.0
    %1868 = vmatpush1.msra.mxu0 0.0
    %1869 = vmatprep.subr.mxu0 0.0
    %1870 = vmatpush1.msra.mxu0 0.0
    %1871 = vmatprep.subr.mxu0 0.0
    %1872 = vmatpush1.msra.mxu0 0.0
    %1873 = vmatprep.subr.mxu0 0.0
    %1874 = vmatpush1.msra.mxu0 0.0
    %1875 = vmatprep.subr.mxu0 0.0
    %1876 = vmatpush1.msra.mxu0 0.0
    %1877 = vmatprep.subr.mxu0 0.0
    %1878 = vmatpush1.msra.mxu0 0.0
    %1879 = vmatprep.subr.mxu0 0.0
    %1880 = vmatpush1.msra.mxu0 0.0
    %1881 = vmatprep.subr.mxu0 0.0
    %1882 = vmatpush1.msra.mxu0 0.0
    %1883 = vmatprep.subr.mxu0 0.0
    %1884 = vmatpush1.msra.mxu0 0.0
    %1885 = vmatprep.subr.mxu0 0.0
    %1886 = vmatpush1.msra.mxu0 0.0
    %1887 = vmatprep.subr.mxu0 0.0
    %1888 = vmatpush1.msra.mxu0 0.0
    %1889 = vmatprep.subr.mxu0 0.0
    %1890 = vmatpush1.msra.mxu0 0.0
    %1891 = vmatprep.subr.mxu0 0.0
    %1892 = vmatpush1.msra.mxu0 0.0
    %1893 = vmatprep.subr.mxu0 0.0
    %1894 = vmatpush1.msra.mxu0 0.0
    %1895 = vmatprep.subr.mxu0 0.0
    %1896 = vmatpush1.msra.mxu0 0.0
    %1897 = vmatprep.subr.mxu0 0.0
    %1898 = vmatpush1.msra.mxu0 0.0
    %1899 = vmatprep.subr.mxu0 0.0
    %1900 = vmatpush1.msra.mxu0 0.0
    %1901 = vmatprep.subr.mxu0 0.0
    %1902 = vmatpush1.msra.mxu0 0.0
    %1903 = vmatprep.subr.mxu0 0.0
    %1904 = vmatpush1.msra.mxu0 0.0
    %1905 = vmatprep.subr.mxu0 0.0
    %1906 = vmatpush1.msra.mxu0 0.0
    %1907 = vmatprep.subr.mxu0 0.0
    %1908 = vmatpush1.msra.mxu0 0.0
    %1909 = vmatprep.subr.mxu0 0.0
    %1910 = vmatpush1.msra.mxu0 0.0
    %1911 = vmatprep.mubr.f32.mxu0 0.0
    %1912 = vmatmul.mubr.f32.gmra.mrb[0].mxu0 %v1842
    %v1913 = vpop.f32.mrb[0].mxu0
    %v1914 = vadd.f32 0.0, %v1913
    %v1915 = vpop.f32.mrb[0].mxu0
    %1916 = vmatprep.mubr.f32.mxu0 0.0
    %1917 = vmatmul.mubr.f32.gmra.mrb[0].mxu0 %v1845
    %v1918 = vpop.f32.mrb[0].mxu0
    %v1919 = vadd.f32 0.0, %v1918
    %v1920 = vpop.f32.mrb[0].mxu0
    %1921 = vdwg.mxu0
    %v1923 = vsel %vm466, %v1629, 0
    %v1926 = vsel %vm466, %v1634, 0
    %1928 = vmatprep.subr.mxu0 0.0
    %1929 = vmatpush1.msra.mxu0 %v1431
    %1930 = vmatprep.subr.mxu0 0.0
    %1931 = vmatpush1.msra.mxu0 %v1432
    %1932 = vmatprep.subr.mxu0 0.0
    %1933 = vmatpush1.msra.mxu0 0.0
    %1934 = vmatprep.subr.mxu0 0.0
    %1935 = vmatpush1.msra.mxu0 0.0
    %1936 = vmatprep.subr.mxu0 0.0
    %1937 = vmatpush1.msra.mxu0 0.0
    %1938 = vmatprep.subr.mxu0 0.0
    %1939 = vmatpush1.msra.mxu0 0.0
    %1940 = vmatprep.subr.mxu0 0.0
    %1941 = vmatpush1.msra.mxu0 0.0
    %1942 = vmatprep.subr.mxu0 0.0
    %1943 = vmatpush1.msra.mxu0 0.0
    %1944 = vmatprep.subr.mxu0 0.0
    %1945 = vmatpush1.msra.mxu0 0.0
    %1946 = vmatprep.subr.mxu0 0.0
    %1947 = vmatpush1.msra.mxu0 0.0
    %1948 = vmatprep.subr.mxu0 0.0
    %1949 = vmatpush1.msra.mxu0 0.0
    %1950 = vmatprep.subr.mxu0 0.0
    %1951 = vmatpush1.msra.mxu0 0.0
    %1952 = vmatprep.subr.mxu0 0.0
    %1953 = vmatpush1.msra.mxu0 0.0
    %1954 = vmatprep.subr.mxu0 0.0
    %1955 = vmatpush1.msra.mxu0 0.0
    %1956 = vmatprep.subr.mxu0 0.0
    %1957 = vmatpush1.msra.mxu0 0.0
    %1958 = vmatprep.subr.mxu0 0.0
    %1959 = vmatpush1.msra.mxu0 0.0
    %1960 = vmatprep.subr.mxu0 0.0
    %1961 = vmatpush1.msra.mxu0 0.0
    %1962 = vmatprep.subr.mxu0 0.0
    %1963 = vmatpush1.msra.mxu0 0.0
    %1964 = vmatprep.subr.mxu0 0.0
    %1965 = vmatpush1.msra.mxu0 0.0
    %1966 = vmatprep.subr.mxu0 0.0
    %1967 = vmatpush1.msra.mxu0 0.0
    %1968 = vmatprep.subr.mxu0 0.0
    %1969 = vmatpush1.msra.mxu0 0.0
    %1970 = vmatprep.subr.mxu0 0.0
    %1971 = vmatpush1.msra.mxu0 0.0
    %1972 = vmatprep.subr.mxu0 0.0
    %1973 = vmatpush1.msra.mxu0 0.0
    %1974 = vmatprep.subr.mxu0 0.0
    %1975 = vmatpush1.msra.mxu0 0.0
    %1976 = vmatprep.subr.mxu0 0.0
    %1977 = vmatpush1.msra.mxu0 0.0
    %1978 = vmatprep.subr.mxu0 0.0
    %1979 = vmatpush1.msra.mxu0 0.0
    %1980 = vmatprep.subr.mxu0 0.0
    %1981 = vmatpush1.msra.mxu0 0.0
    %1982 = vmatprep.subr.mxu0 0.0
    %1983 = vmatpush1.msra.mxu0 0.0
    %1984 = vmatprep.subr.mxu0 0.0
    %1985 = vmatpush1.msra.mxu0 0.0
    %1986 = vmatprep.subr.mxu0 0.0
    %1987 = vmatpush1.msra.mxu0 0.0
    %1988 = vmatprep.subr.mxu0 0.0
    %1989 = vmatpush1.msra.mxu0 0.0
    %1990 = vmatprep.subr.mxu0 0.0
    %1991 = vmatpush1.msra.mxu0 0.0
    %1992 = vmatprep.mubr.f32.mxu0 0.0
    %1993 = vmatmul.mubr.f32.gmra.mrb[0].mxu0 %v1923
    %v1994 = vpop.f32.mrb[0].mxu0
    %v1995 = vadd.f32 %v1914, %v1994
    %v1996 = vpop.f32.mrb[0].mxu0
    %1997 = vmatprep.mubr.f32.mxu0 0.0
    %1998 = vmatmul.mubr.f32.gmra.mrb[0].mxu0 %v1926
    %v1999 = vpop.f32.mrb[0].mxu0
    %v2000 = vadd.f32 %v1919, %v1999
    %v2001 = vpop.f32.mrb[0].mxu0
    %2002 = vdwg.mxu0
    %s2003 = scalar_lea.vmem %s12, 1
    %v2004 = vld [vmem:[%s2003] sm:$0x1]
    %v2006 = vlaneseq
    %v2007 = vshrl.u32 %v2006, 7
    %v2008 = vsub.s32 0, %v2007
    %v2009 = vrot.slane %v2004, %v2008
    %v2011 = vadd.f32 %v1995, %v2009
    %v2012 = vadd.f32 %v2000, %v2009
    %v2013 = vadd.f32 %v1334, %v2011
    %v2014 = vadd.f32 %v1335, %v2012
    %s2015 = scalar_lea.vmem %s13, 1
    %v2016 = vld [vmem:[%s2015] sm:$0x1]
    %s2017 = scalar_lea.vmem %s14, 1
    %v2018 = vld [vmem:[%s2017] sm:$0x1]
    %v2019 = vsel %vm320, %v2013, 0.0
    %2020 = vadd.xlane.f32.xlu0 %v2019
    %v2021 = vpop.xlane.xlu0 %2020
    %v2022 = vsel %vm320, %v2014, 0.0
    %2023 = vadd.xlane.f32.xlu0 %v2022
    %v2024 = vpop.xlane.xlu0 %2023
    %v2025 = vmul.f32 %v2021, %v327
    %v2026 = vmul.f32 %v2024, %v327
    %v2027 = vsub.f32 %v2013, %v2025
    %v2028 = vsub.f32 %v2014, %v2026
    %v2029 = vmul.f32 %v2027, %v2027
    %v2030 = vmul.f32 %v2028, %v2028
    %v2031 = vsel %vm320, %v2029, 0.0
    %2032 = vadd.xlane.f32.xlu0 %v2031
    %v2033 = vpop.xlane.xlu0 %2032
    %v2034 = vsel %vm320, %v2030, 0.0
    %2035 = vadd.xlane.f32.xlu0 %v2034
    %v2036 = vpop.xlane.xlu0 %2035
    %v2037 = vmul.f32 %v2033, %v327
    %v2038 = vmul.f32 %v2036, %v327
    %v2039 = vadd.f32 %v2037, 1e-12
    %v2040 = vadd.f32 %v2038, 1e-12
    %v2041 = vrsqrt.pop %v2039
    %v2042 = vrsqrt.pop %v2040
    %v2043 = vmul.f32 %v2027, %v2041
    %v2044 = vmul.f32 %v2028, %v2042
    %v2046 = vlaneseq
    %v2047 = vshrl.u32 %v2046, 7
    %v2048 = vsub.s32 0, %v2047
    %v2049 = vrot.slane %v2016, %v2048
    %v2051 = vmul.f32 %v2043, %v2049
    %v2052 = vmul.f32 %v2044, %v2049
    %v2054 = vlaneseq
    %v2055 = vshrl.u32 %v2054, 7
    %v2056 = vsub.s32 0, %v2055
    %v2057 = vrot.slane %v2018, %v2056
    %v2059 = vadd.f32 %v2051, %v2057
    %v2060 = vadd.f32 %v2052, %v2057
    %s2061 = scalar_lea.vmem %s15, 32
    %v2062 = vld [vmem:[%s2061] sm:$0xff]
    %v2063 = vld [vmem:[%s2061 + $0x8] sm:$0xff]
    %v2064 = vld [vmem:[%s2061 + $0x10] sm:$0xff]
    %v2065 = vld [vmem:[%s2061 + $0x18] sm:$0xff]
    %s2066 = scalar_lea.vmem %s16, 1
    %v2067 = vld [vmem:[%s2066] sm:$0x1]
    %v2069 = vlaneseq
    %v2070 = vshrl.u32 %v2069, 7
    %v2071 = vsub.s32 0, %v2070
    %v2072 = vrot.slane %v2067, %v2071
    %v2075 = vsel %vm320, %v2059, 0
    %v2078 = vsel %vm320, %v2060, 0
    %2080 = vmatprep.subr.mxu0 0.0
    %2081 = vmatpush1.msra.mxu0 %v2062
    %2082 = vmatprep.subr.mxu0 0.0
    %2083 = vmatpush1.msra.mxu0 %v2063
    %2084 = vmatprep.subr.mxu0 0.0
    %2085 = vmatpush1.msra.mxu0 %v2064
    %2086 = vmatprep.subr.mxu0 0.0
    %2087 = vmatpush1.msra.mxu0 %v2065
    %2088 = vmatprep.subr.mxu0 0.0
    %2089 = vmatpush1.msra.mxu0 0.0
    %2090 = vmatprep.subr.mxu0 0.0
    %2091 = vmatpush1.msra.mxu0 0.0
    %2092 = vmatprep.subr.mxu0 0.0
    %2093 = vmatpush1.msra.mxu0 0.0
    %2094 = vmatprep.subr.mxu0 0.0
    %2095 = vmatpush1.msra.mxu0 0.0
    %2096 = vmatprep.subr.mxu0 0.0
    %2097 = vmatpush1.msra.mxu0 0.0
    %2098 = vmatprep.subr.mxu0 0.0
    %2099 = vmatpush1.msra.mxu0 0.0
    %2100 = vmatprep.subr.mxu0 0.0
    %2101 = vmatpush1.msra.mxu0 0.0
    %2102 = vmatprep.subr.mxu0 0.0
    %2103 = vmatpush1.msra.mxu0 0.0
    %2104 = vmatprep.subr.mxu0 0.0
    %2105 = vmatpush1.msra.mxu0 0.0
    %2106 = vmatprep.subr.mxu0 0.0
    %2107 = vmatpush1.msra.mxu0 0.0
    %2108 = vmatprep.subr.mxu0 0.0
    %2109 = vmatpush1.msra.mxu0 0.0
    %2110 = vmatprep.subr.mxu0 0.0
    %2111 = vmatpush1.msra.mxu0 0.0
    %2112 = vmatprep.subr.mxu0 0.0
    %2113 = vmatpush1.msra.mxu0 0.0
    %2114 = vmatprep.subr.mxu0 0.0
    %2115 = vmatpush1.msra.mxu0 0.0
    %2116 = vmatprep.subr.mxu0 0.0
    %2117 = vmatpush1.msra.mxu0 0.0
    %2118 = vmatprep.subr.mxu0 0.0
    %2119 = vmatpush1.msra.mxu0 0.0
    %2120 = vmatprep.subr.mxu0 0.0
    %2121 = vmatpush1.msra.mxu0 0.0
    %2122 = vmatprep.subr.mxu0 0.0
    %2123 = vmatpush1.msra.mxu0 0.0
    %2124 = vmatprep.subr.mxu0 0.0
    %2125 = vmatpush1.msra.mxu0 0.0
    %2126 = vmatprep.subr.mxu0 0.0
    %2127 = vmatpush1.msra.mxu0 0.0
    %2128 = vmatprep.subr.mxu0 0.0
    %2129 = vmatpush1.msra.mxu0 0.0
    %2130 = vmatprep.subr.mxu0 0.0
    %2131 = vmatpush1.msra.mxu0 0.0
    %2132 = vmatprep.subr.mxu0 0.0
    %2133 = vmatpush1.msra.mxu0 0.0
    %2134 = vmatprep.subr.mxu0 0.0
    %2135 = vmatpush1.msra.mxu0 0.0
    %2136 = vmatprep.subr.mxu0 0.0
    %2137 = vmatpush1.msra.mxu0 0.0
    %2138 = vmatprep.subr.mxu0 0.0
    %2139 = vmatpush1.msra.mxu0 0.0
    %2140 = vmatprep.subr.mxu0 0.0
    %2141 = vmatpush1.msra.mxu0 0.0
    %2142 = vmatprep.subr.mxu0 0.0
    %2143 = vmatpush1.msra.mxu0 0.0
    %2144 = vmatprep.mubr.f32.mxu0 0.0
    %2145 = vmatmul.mubr.f32.gmra.mrb[0].mxu0 %v2075
    %v2146 = vpop.f32.mrb[0].mxu0
    %v2147 = vadd.f32 %v2072, %v2146
    %v2148 = vpop.f32.mrb[0].mxu0
    %2149 = vmatprep.mubr.f32.mxu0 0.0
    %2150 = vmatmul.mubr.f32.gmra.mrb[0].mxu0 %v2078
    %v2151 = vpop.f32.mrb[0].mxu0
    %v2152 = vadd.f32 %v2072, %v2151
    %v2153 = vpop.f32.mrb[0].mxu0
    %2154 = vdwg.mxu0
    %v2155 = vmul.f32 %v2147, 0.5
    %v2156 = vmul.f32 %v2152, 0.5
    %v2157 = vmul.f32 %v2147, 0.044715
    %v2158 = vmul.f32 %v2152, 0.044715
    %v2159 = vmul.f32 %v2157, %v2147
    %v2160 = vmul.f32 %v2158, %v2152
    %v2161 = vmul.f32 %v2159, %v2147
    %v2162 = vmul.f32 %v2160, %v2152
    %v2163 = vadd.f32 %v2147, %v2161
    %v2164 = vadd.f32 %v2152, %v2162
    %v2165 = vmul.f32 %v2163, 0.7978846
    %v2166 = vmul.f32 %v2164, 0.7978846
    %v2167 = vtanh.pop %v2165
    %v2168 = vtanh.pop %v2166
    %v2169 = vadd.f32 %v2167, 1.0
    %v2170 = vadd.f32 %v2168, 1.0
    %v2171 = vmul.f32 %v2155, %v2169
    %v2172 = vmul.f32 %v2156, %v2170
    %s2173 = scalar_lea.vmem %s17, 64
    %v2174 = vld [vmem:[%s2173] sm:$0xff]
    %v2175 = vld [vmem:[%s2173 + $0x8] sm:$0xff]
    %v2176 = vld [vmem:[%s2173 + $0x10] sm:$0xff]
    %v2177 = vld [vmem:[%s2173 + $0x18] sm:$0xff]
    %v2178 = vld [vmem:[%s2173 + $0x20] sm:$0xff]
    %v2179 = vld [vmem:[%s2173 + $0x28] sm:$0xff]
    %v2180 = vld [vmem:[%s2173 + $0x30] sm:$0xff]
    %v2181 = vld [vmem:[%s2173 + $0x38] sm:$0xff]
    %s2182 = scalar_lea.vmem %s18, 1
    %v2183 = vld [vmem:[%s2182] sm:$0x1]
    %v2185 = vlaneseq
    %v2186 = vshrl.u32 %v2185, 7
    %v2187 = vsub.s32 0, %v2186
    %v2188 = vrot.slane %v2183, %v2187
    %v2191 = vsel %vm120, %v2171, 0
    %v2194 = vsel %vm120, %v2172, 0
    %2196 = vmatprep.subr.mxu0 0.0
    %2197 = vmatpush1.msra.mxu0 %v2174
    %2198 = vmatprep.subr.mxu0 0.0
    %2199 = vmatpush1.msra.mxu0 %v2175
    %2200 = vmatprep.subr.mxu0 0.0
    %2201 = vmatpush1.msra.mxu0 %v2176
    %2202 = vmatprep.subr.mxu0 0.0
    %2203 = vmatpush1.msra.mxu0 %v2177
    %2204 = vmatprep.subr.mxu0 0.0
    %2205 = vmatpush1.msra.mxu0 %v2178
    %2206 = vmatprep.subr.mxu0 0.0
    %2207 = vmatpush1.msra.mxu0 %v2179
    %2208 = vmatprep.subr.mxu0 0.0
    %2209 = vmatpush1.msra.mxu0 %v2180
    %2210 = vmatprep.subr.mxu0 0.0
    %2211 = vmatpush1.msra.mxu0 %v2181
    %2212 = vmatprep.subr.mxu0 0.0
    %2213 = vmatpush1.msra.mxu0 0.0
    %2214 = vmatprep.subr.mxu0 0.0
    %2215 = vmatpush1.msra.mxu0 0.0
    %2216 = vmatprep.subr.mxu0 0.0
    %2217 = vmatpush1.msra.mxu0 0.0
    %2218 = vmatprep.subr.mxu0 0.0
    %2219 = vmatpush1.msra.mxu0 0.0
    %2220 = vmatprep.subr.mxu0 0.0
    %2221 = vmatpush1.msra.mxu0 0.0
    %2222 = vmatprep.subr.mxu0 0.0
    %2223 = vmatpush1.msra.mxu0 0.0
    %2224 = vmatprep.subr.mxu0 0.0
    %2225 = vmatpush1.msra.mxu0 0.0
    %2226 = vmatprep.subr.mxu0 0.0
    %2227 = vmatpush1.msra.mxu0 0.0
    %2228 = vmatprep.subr.mxu0 0.0
    %2229 = vmatpush1.msra.mxu0 0.0
    %2230 = vmatprep.subr.mxu0 0.0
    %2231 = vmatpush1.msra.mxu0 0.0
    %2232 = vmatprep.subr.mxu0 0.0
    %2233 = vmatpush1.msra.mxu0 0.0
    %2234 = vmatprep.subr.mxu0 0.0
    %2235 = vmatpush1.msra.mxu0 0.0
    %2236 = vmatprep.subr.mxu0 0.0
    %2237 = vmatpush1.msra.mxu0 0.0
    %2238 = vmatprep.subr.mxu0 0.0
    %2239 = vmatpush1.msra.mxu0 0.0
    %2240 = vmatprep.subr.mxu0 0.0
    %2241 = vmatpush1.msra.mxu0 0.0
    %2242 = vmatprep.subr.mxu0 0.0
    %2243 = vmatpush1.msra.mxu0 0.0
    %2244 = vmatprep.subr.mxu0 0.0
    %2245 = vmatpush1.msra.mxu0 0.0
    %2246 = vmatprep.subr.mxu0 0.0
    %2247 = vmatpush1.msra.mxu0 0.0
    %2248 = vmatprep.subr.mxu0 0.0
    %2249 = vmatpush1.msra.mxu0 0.0
    %2250 = vmatprep.subr.mxu0 0.0
    %2251 = vmatpush1.msra.mxu0 0.0
    %2252 = vmatprep.subr.mxu0 0.0
    %2253 = vmatpush1.msra.mxu0 0.0
    %2254 = vmatprep.subr.mxu0 0.0
    %2255 = vmatpush1.msra.mxu0 0.0
    %2256 = vmatprep.subr.mxu0 0.0
    %2257 = vmatpush1.msra.mxu0 0.0
    %2258 = vmatprep.subr.mxu0 0.0
    %2259 = vmatpush1.msra.mxu0 0.0
    %2260 = vmatprep.mubr.f32.mxu0 0.0
    %2261 = vmatmul.mubr.f32.gmra.mrb[0].mxu0 %v2191
    %v2262 = vpop.f32.mrb[0].mxu0
    %v2263 = vadd.f32 %v2188, %v2262
    %v2264 = vpop.f32.mrb[0].mxu0
    %2265 = vmatprep.mubr.f32.mxu0 0.0
    %2266 = vmatmul.mubr.f32.gmra.mrb[0].mxu0 %v2194
    %v2267 = vpop.f32.mrb[0].mxu0
    %v2268 = vadd.f32 %v2188, %v2267
    %v2269 = vpop.f32.mrb[0].mxu0
    %2270 = vdwg.mxu0
    %v2271 = vadd.f32 %v2059, %v2263
    %v2272 = vadd.f32 %v2060, %v2268
    %s2273 = scalar_lea.vmem %s19, 1
    %v2274 = vld [vmem:[%s2273] sm:$0x1]
    %s2275 = scalar_lea.vmem %s20, 1
    %v2276 = vld [vmem:[%s2275] sm:$0x1]
    %v2277 = vsel %vm320, %v2271, 0.0
    %2278 = vadd.xlane.f32.xlu0 %v2277
    %v2279 = vpop.xlane.xlu0 %2278
    %v2280 = vsel %vm320, %v2272, 0.0
    %2281 = vadd.xlane.f32.xlu0 %v2280
    %v2282 = vpop.xlane.xlu0 %2281
    %v2283 = vmul.f32 %v2279, %v327
    %v2284 = vmul.f32 %v2282, %v327
    %v2285 = vsub.f32 %v2271, %v2283
    %v2286 = vsub.f32 %v2272, %v2284
    %v2287 = vmul.f32 %v2285, %v2285
    %v2288 = vmul.f32 %v2286, %v2286
    %v2289 = vsel %vm320, %v2287, 0.0
    %2290 = vadd.xlane.f32.xlu0 %v2289
    %v2291 = vpop.xlane.xlu0 %2290
    %v2292 = vsel %vm320, %v2288, 0.0
    %2293 = vadd.xlane.f32.xlu0 %v2292
    %v2294 = vpop.xlane.xlu0 %2293
    %v2295 = vmul.f32 %v2291, %v327
    %v2296 = vmul.f32 %v2294, %v327
    %v2297 = vadd.f32 %v2295, 1e-12
    %v2298 = vadd.f32 %v2296, 1e-12
    %v2299 = vrsqrt.pop %v2297
    %v2300 = vrsqrt.pop %v2298
    %v2301 = vmul.f32 %v2285, %v2299
    %v2302 = vmul.f32 %v2286, %v2300
    %v2304 = vlaneseq
    %v2305 = vshrl.u32 %v2304, 7
    %v2306 = vsub.s32 0, %v2305
    %v2307 = vrot.slane %v2274, %v2306
    %v2309 = vmul.f32 %v2301, %v2307
    %v2310 = vmul.f32 %v2302, %v2307
    %v2312 = vlaneseq
    %v2313 = vshrl.u32 %v2312, 7
    %v2314 = vsub.s32 0, %v2313
    %v2315 = vrot.slane %v2276, %v2314
    %v2317 = vadd.f32 %v2309, %v2315
    %v2318 = vadd.f32 %v2310, %v2315
    %2319 = vst.msk [vmem:[#allocation2] sm:$0xff] %vm320, %v2317
    %2320 = vst.msk [vmem:[#allocation2 + $0x8] sm:$0xff] %vm320, %v2318
    // Predicated region
    $region86: #{text_encoder_forward.1} parent=1 // pred_check
      _
    $region87: #{text_encoder_forward.1} parent=1 // pred_check_branch
      %2322 = sbr.rel (0) target = $region89
    $region88: #{text_encoder_forward.1} parent=1 // pred_region
      %s2324 = ssub.s32 256, 256
      %2325 = vsyncadd [#allocation3], %s2324
      %s2326 = sshll.u32 [#allocation2], 4
      %s2327 = int_to_ptr.vmem [resolvable:$true] %s2326
      %2332 = dma.vmem_to_hbm [thread:$0]  %s2327, 256, %s21, [#allocation3], 128, 128, 8
    $region89: #{text_encoder_forward.1} parent=1 // pred_fallthru
      _
    // Predicated region
    $region90: #{text_encoder_forward.1} parent=1 // pred_check
      _
    $region91: #{text_encoder_forward.1} parent=1 // pred_check_branch
      %2334 = sbr.rel (0) target = $region93
    $region92: #{text_encoder_forward.1} parent=1 // pred_region
      %2335 = dma.done [#allocation3], 256
    $region93: #{text_encoder_forward.1} parent=1 // pred_fallthru
      _
    %2336 = vsyncpa [#allocation3], 1

</llo_original>
